<compile_context>
chip_gen: v5e
topology: v5e:2x2
jax: 0.10.0
libtpu: 0.0.40
codegen_flags: <defaults>
</compile_context>

<pallas_src>
import functools
import math

import jax
import jax.numpy as jnp
from jax.experimental import pallas as pl
from jax.experimental.pallas import tpu as pltpu


# ----------------------------- kernel ----------------------------------------


def _layernorm(x, gamma, beta, eps=1e-5):
    mean = jnp.mean(x, axis=-1, keepdims=True)
    var = jnp.mean((x - mean) ** 2, axis=-1, keepdims=True)
    return (x - mean) * jax.lax.rsqrt(var + eps) * gamma + beta


def fused_encoder_kernel(batch, seq, n_heads,
                         # inputs (constant across grid unless noted):
                         x_ref,        # [B*S, Din]   f32
                         pe_ref,       # [B*S, E]     f32
                         emb_w_ref,    # [Din, E]     bf16
                         emb_b_ref,    # [1, E]       f32
                         # per-layer (leading layer axis, block (1, ...)):
                         ln1_g_ref, ln1_b_ref,   # [1,1,E] f32
                         wqkv_ref,     # [1, E, 3E]   bf16 (fused q|k|v)
                         bqkv_ref,     # [1, 1, 3E]   f32
                         wo_ref,       # [1, H, dh, E] bf16
                         bo_ref,       # [1, 1, E]    f32
                         ln2_g_ref, ln2_b_ref,   # [1,1,E] f32
                         w1_ref,       # [1, E, F]    bf16
                         b1_ref,       # [1, 1, F]    f32
                         w2_ref,       # [1, F, E]    bf16
                         b2_ref,       # [1, 1, E]    f32
                         # constant:
                         out_w_ref,    # [E, Dout]    bf16
                         out_b_ref,    # [1, Dout]    f32
                         # output:
                         o_ref,        # [B*S, Dout]  f32
                         # scratch:
                         act_ref):     # [B*S, E]     f32 resident residual stream
    layer = pl.program_id(0)
    rows, embed = act_ref.shape
    dh = embed // n_heads
    scale = 1.0 / math.sqrt(dh)
    bf16 = jnp.bfloat16
    f32 = jnp.float32

    # ---- step 0: embedding + positional encoding --------------------------
    @pl.when(layer == 0)
    def _():
        xe = jnp.dot(x_ref[...].astype(bf16), emb_w_ref[...],
                     preferred_element_type=f32)
        act_ref[...] = xe + emb_b_ref[...] + pe_ref[...]

    x = act_ref[...]                                        # [rows, E] f32

    # ---- self-attention sublayer (pre-LN) ----------------------------------
    nx = _layernorm(x, ln1_g_ref[0], ln1_b_ref[0]).astype(bf16)
    qkv = jnp.dot(nx, wqkv_ref[0], preferred_element_type=f32) + bqkv_ref[0]

    attn = jnp.zeros((rows, embed), f32)
    for h in range(n_heads):
        qh = qkv[:, h * dh:(h + 1) * dh].reshape(batch, seq, dh).astype(bf16)
        kh = qkv[:, embed + h * dh: embed + (h + 1) * dh]\
            .reshape(batch, seq, dh).astype(bf16)
        vh = qkv[:, 2 * embed + h * dh: 2 * embed + (h + 1) * dh]\
            .reshape(batch, seq, dh).astype(bf16)

        s = jnp.einsum('bqd,bkd->bqk', qh, kh,
                       preferred_element_type=f32) * scale       # [B, S, S] f32
        s = s - jnp.max(s, axis=-1, keepdims=True)
        p = jnp.exp(s)
        p = p * pl.reciprocal(jnp.sum(p, axis=-1, keepdims=True), approx=True)
        oh = jnp.einsum('bqk,bkd->bqd', p.astype(bf16), vh,
                        preferred_element_type=f32)               # [B, S, dh]
        # recombine heads via the output projection (no lane concatenate)
        attn = attn + jnp.dot(oh.reshape(rows, dh).astype(bf16), wo_ref[0, h],
                              preferred_element_type=f32)

    res = x + attn + bo_ref[0]                               # residual

    # ---- feed-forward sublayer (pre-LN) -------------------------------------
    nres = _layernorm(res, ln2_g_ref[0], ln2_b_ref[0]).astype(bf16)
    h1 = jnp.dot(nres, w1_ref[0], preferred_element_type=f32) + b1_ref[0]
    h1 = jnp.maximum(h1, 0.0).astype(bf16)
    ff = jnp.dot(h1, w2_ref[0], preferred_element_type=f32) + b2_ref[0]
    new_act = res + ff
    act_ref[...] = new_act                                    # keep resident

    # ---- last step: output linear -------------------------------------------
    @pl.when(layer == pl.num_programs(0) - 1)
    def _():
        o_ref[...] = jnp.dot(new_act.astype(bf16), out_w_ref[...],
                             preferred_element_type=f32) + out_b_ref[...]


# ----------------------------- wrapper ----------------------------------------


def _const_spec(arr):
    n = arr.ndim
    return pl.BlockSpec(arr.shape, lambda l, n=n: (0,) * n)


def _layer_spec(arr):
    n = arr.ndim
    return pl.BlockSpec((1,) + arr.shape[1:], lambda l, n=n: (l,) + (0,) * (n - 1))


def positional_embedding(seq_len, hidden_size, start=1):
    # Matches PositionEmbedding: interleaved (sin, cos) pairs along hidden dim.
    power = jnp.arange(0, hidden_size, 2, dtype=jnp.float32) / hidden_size
    divisor = 10000.0 ** power                                   # [E/2]
    pos = jnp.arange(start, seq_len + start, dtype=jnp.float32)[:, None]
    angles = pos / divisor[None, :]                              # [S, E/2]
    pe = jnp.stack([jnp.sin(angles), jnp.cos(angles)], axis=-1)  # [S, E/2, 2]
    return pe.reshape(seq_len, hidden_size)                      # [S, E]


def transformer_encoder_forward(x, params, n_heads):
    B, S, Din = x.shape
    E = params["emb_w"].shape[1]
    Dout = params["out_w"].shape[1]
    L = params["wqkv"].shape[0]
    rows = B * S

    pe = positional_embedding(S, E, start=1)
    pe_tiled = jnp.tile(pe, (B, 1))                 # [B*S, E]
    x2 = x.reshape(rows, Din)

    arg_names = ["ln1_g", "ln1_b", "wqkv", "bqkv", "wo", "bo",
                 "ln2_g", "ln2_b", "w1", "b1", "w2", "b2"]
    layer_args = [params[n] for n in arg_names]

    in_specs = ([_const_spec(x2), _const_spec(pe_tiled),
                 _const_spec(params["emb_w"]), _const_spec(params["emb_b"])]
                + [_layer_spec(a) for a in layer_args]
                + [_const_spec(params["out_w"]), _const_spec(params["out_b"])])

    grid_spec = pltpu.PrefetchScalarGridSpec(
        num_scalar_prefetch=0,
        grid=(L,),
        in_specs=in_specs,
        out_specs=pl.BlockSpec((rows, Dout), lambda l: (0, 0)),
        scratch_shapes=[pltpu.VMEM((rows, E), jnp.float32)],
    )

    out = pl.pallas_call(
        functools.partial(fused_encoder_kernel, B, S, n_heads),
        out_shape=jax.ShapeDtypeStruct((rows, Dout), jnp.float32),
        grid_spec=grid_spec,
        compiler_params=pltpu.CompilerParams(
            dimension_semantics=("arbitrary",),
            vmem_limit_bytes=64 * 1024 * 1024),
    )(x2, pe_tiled, params["emb_w"], params["emb_b"],
      *layer_args, params["out_w"], params["out_b"])

    return out.reshape(B, S, Dout)


# --------------------------- parameter setup ----------------------------------


def _xavier(key, fan_in, fan_out):
    limit = math.sqrt(6.0 / (fan_in + fan_out))
    return jax.random.uniform(key, (fan_in, fan_out), jnp.float32, -limit, limit)


def init_params(key, seq_input_size, embed_size, output_size,
                n_layers, n_heads, d_filter):
    keys = iter(jax.random.split(key, 8 + n_layers * 8))
    dh = embed_size // n_heads
    bf16 = jnp.bfloat16

    p = {}
    p["emb_w"] = _xavier(next(keys), seq_input_size, embed_size).astype(bf16)
    p["emb_b"] = jax.random.uniform(next(keys), (1, embed_size), jnp.float32,
                                    -0.01, 0.01)

    per_layer = {n: [] for n in ["ln1_g", "ln1_b", "wqkv", "bqkv", "wo", "bo",
                                 "ln2_g", "ln2_b", "w1", "b1", "w2", "b2"]}
    for _ in range(n_layers):
        wq = _xavier(next(keys), embed_size, embed_size)
        wk = _xavier(next(keys), embed_size, embed_size)
        wv = _xavier(next(keys), embed_size, embed_size)
        wo = _xavier(next(keys), embed_size, embed_size)
        w1 = _xavier(next(keys), embed_size, d_filter)
        w2 = _xavier(next(keys), d_filter, embed_size)

        per_layer["ln1_g"].append(jnp.ones((1, embed_size), jnp.float32))
        per_layer["ln1_b"].append(jnp.zeros((1, embed_size), jnp.float32))
        per_layer["wqkv"].append(
            jnp.concatenate([wq, wk, wv], axis=1).astype(bf16))     # [E, 3E]
        per_layer["bqkv"].append(jnp.zeros((1, 3 * embed_size), jnp.float32))
        per_layer["wo"].append(
            wo.reshape(n_heads, dh, embed_size).astype(bf16))       # [H, dh, E]
        per_layer["bo"].append(jnp.zeros((1, embed_size), jnp.float32))
        per_layer["ln2_g"].append(jnp.ones((1, embed_size), jnp.float32))
        per_layer["ln2_b"].append(jnp.zeros((1, embed_size), jnp.float32))
        per_layer["w1"].append(w1.astype(bf16))
        per_layer["b1"].append(jnp.zeros((1, d_filter), jnp.float32))
        per_layer["w2"].append(w2.astype(bf16))
        per_layer["b2"].append(jnp.zeros((1, embed_size), jnp.float32))

    for name, arrs in per_layer.items():
        p[name] = jnp.stack(arrs, axis=0)       # leading layer axis

    p["out_w"] = _xavier(next(keys), embed_size, output_size).astype(bf16)
    p["out_b"] = jax.random.uniform(next(keys), (1, output_size), jnp.float32,
                                    -0.01, 0.01)
    return p


# ------------------------------- main -----------------------------------------


if __name__ == "__main__":
    B, S = 2, 8
    seq_input_size = 16
    embed_size = 32
    output_size = 16
    n_layers = 2
    n_heads = 4
    d_filter = 64

    key = jax.random.PRNGKey(0)
    kx, kp = jax.random.split(key)
    x = jax.random.normal(kx, (B, S, seq_input_size), jnp.float32)
    params = init_params(kp, seq_input_size, embed_size, output_size,
                         n_layers, n_heads, d_filter)

    out = transformer_encoder_forward(x, params, n_heads)
    out = jax.block_until_ready(out)

    assert out.shape == (B, S, output_size), out.shape
    assert bool(jnp.all(jnp.isfinite(out)))
    print("KERNEL_OK")
</pallas_src>

<mosaic_0001>
module attributes {stable_mosaic.version = 11 : i64} {
  func.func @fused_encoder_kernel(%arg0: i32, %arg1: memref<16x16xf32, #tpu.memory_space<vmem>>, %arg2: memref<16x32xf32, #tpu.memory_space<vmem>>, %arg3: memref<16x32xbf16, #tpu.memory_space<vmem>>, %arg4: memref<1x32xf32, #tpu.memory_space<vmem>>, %arg5: memref<1x1x32xf32, #tpu.memory_space<vmem>>, %arg6: memref<1x1x32xf32, #tpu.memory_space<vmem>>, %arg7: memref<1x32x96xbf16, #tpu.memory_space<vmem>>, %arg8: memref<1x1x96xf32, #tpu.memory_space<vmem>>, %arg9: memref<1x4x8x32xbf16, #tpu.memory_space<vmem>>, %arg10: memref<1x1x32xf32, #tpu.memory_space<vmem>>, %arg11: memref<1x1x32xf32, #tpu.memory_space<vmem>>, %arg12: memref<1x1x32xf32, #tpu.memory_space<vmem>>, %arg13: memref<1x32x64xbf16, #tpu.memory_space<vmem>>, %arg14: memref<1x1x64xf32, #tpu.memory_space<vmem>>, %arg15: memref<1x64x32xbf16, #tpu.memory_space<vmem>>, %arg16: memref<1x1x32xf32, #tpu.memory_space<vmem>>, %arg17: memref<32x16xbf16, #tpu.memory_space<vmem>>, %arg18: memref<1x16xf32, #tpu.memory_space<vmem>>, %arg19: memref<16x16xf32, #tpu.memory_space<vmem>>, %arg20: memref<16x32xf32, #tpu.memory_space<vmem>>) attributes {dimension_semantics = [#tpu.dimension_semantics<arbitrary>], iteration_bounds = array<i64: 2>, scalar_prefetch = 0 : i64, scratch_operands = 1 : i64, tpu.core_type = #tpu.core_type<tc>, window_params = [{pipeline_mode = #tpu.pipeline_mode<synchronous>, transform_indices = @transform_0, window_bounds = array<i64: 16, 16>}, {pipeline_mode = #tpu.pipeline_mode<synchronous>, transform_indices = @transform_1, window_bounds = array<i64: 16, 32>}, {pipeline_mode = #tpu.pipeline_mode<synchronous>, transform_indices = @transform_2, window_bounds = array<i64: 16, 32>}, {pipeline_mode = #tpu.pipeline_mode<synchronous>, transform_indices = @transform_3, window_bounds = array<i64: 1, 32>}, {transform_indices = @transform_4, window_bounds = array<i64: 1, 1, 32>}, {transform_indices = @transform_5, window_bounds = array<i64: 1, 1, 32>}, {transform_indices = @transform_6, window_bounds = array<i64: 1, 32, 96>}, {transform_indices = @transform_7, window_bounds = array<i64: 1, 1, 96>}, {transform_indices = @transform_8, window_bounds = array<i64: 1, 4, 8, 32>}, {transform_indices = @transform_9, window_bounds = array<i64: 1, 1, 32>}, {transform_indices = @transform_10, window_bounds = array<i64: 1, 1, 32>}, {transform_indices = @transform_11, window_bounds = array<i64: 1, 1, 32>}, {transform_indices = @transform_12, window_bounds = array<i64: 1, 32, 64>}, {transform_indices = @transform_13, window_bounds = array<i64: 1, 1, 64>}, {transform_indices = @transform_14, window_bounds = array<i64: 1, 64, 32>}, {transform_indices = @transform_15, window_bounds = array<i64: 1, 1, 32>}, {pipeline_mode = #tpu.pipeline_mode<synchronous>, transform_indices = @transform_16, window_bounds = array<i64: 32, 16>}, {pipeline_mode = #tpu.pipeline_mode<synchronous>, transform_indices = @transform_17, window_bounds = array<i64: 1, 16>}, {pipeline_mode = #tpu.pipeline_mode<synchronous>, transform_indices = @transform_18, window_bounds = array<i64: 16, 16>}]} {
    %c0_i32 = arith.constant 0 : i32
    %0 = arith.cmpi eq, %arg0, %c0_i32 : i32
    %1 = arith.extui %0 : i1 to i32
    %c0_i32_0 = arith.constant 0 : i32
    %2 = arith.cmpi ne, %1, %c0_i32_0 : i32
    scf.if %2 {
      %c0_89 = arith.constant 0 : index
      %c0_90 = arith.constant 0 : index
      %213 = vector.load %arg1[%c0_89, %c0_90] : memref<16x16xf32, #tpu.memory_space<vmem>>, vector<16x16xf32>
      %214 = arith.truncf %213 : vector<16x16xf32> to vector<16x16xbf16>
      %c0_91 = arith.constant 0 : index
      %c0_92 = arith.constant 0 : index
      %215 = vector.load %arg3[%c0_91, %c0_92] : memref<16x32xbf16, #tpu.memory_space<vmem>>, vector<16x32xbf16>
      %cst_93 = arith.constant dense<0.000000e+00> : vector<16x32xf32>
      %216 = tpu.matmul %214, %215, %cst_93 {dimension_numbers = #tpu.dot_dimension_numbers<[1], [0], [0], [1], [0, 0, 1, 1], [], []>} : vector<16x16xbf16>, vector<16x32xbf16>, vector<16x32xf32> -> vector<16x32xf32>
      %c0_94 = arith.constant 0 : index
      %c0_95 = arith.constant 0 : index
      %217 = vector.load %arg4[%c0_94, %c0_95] : memref<1x32xf32, #tpu.memory_space<vmem>>, vector<1x32xf32>
      %218 = vector.broadcast %217 : vector<1x32xf32> to vector<16x32xf32>
      %219 = arith.addf %216, %218 : vector<16x32xf32>
      %c0_96 = arith.constant 0 : index
      %c0_97 = arith.constant 0 : index
      %220 = vector.load %arg2[%c0_96, %c0_97] : memref<16x32xf32, #tpu.memory_space<vmem>>, vector<16x32xf32>
      %221 = arith.addf %219, %220 : vector<16x32xf32>
      %c0_98 = arith.constant 0 : index
      %c0_99 = arith.constant 0 : index
      %222 = vector.load %arg20[%c0_98, %c0_99] : memref<16x32xf32, #tpu.memory_space<vmem>>, vector<16x32xf32>
      tpu.vector_store %arg20[%c0_98, %c0_99], %221 {strides = array<i32>} : memref<16x32xf32, #tpu.memory_space<vmem>>, vector<16x32xf32>,
    } else {
    }
    %c0 = arith.constant 0 : index
    %c0_1 = arith.constant 0 : index
    %3 = vector.load %arg20[%c0, %c0_1] : memref<16x32xf32, #tpu.memory_space<vmem>>, vector<16x32xf32>
    %c0_2 = arith.constant 0 : index
    %c0_3 = arith.constant 0 : index
    %c0_4 = arith.constant 0 : index
    %4 = vector.load %arg5[%c0_2, %c0_3, %c0_4] : memref<1x1x32xf32, #tpu.memory_space<vmem>>, vector<1x1x32xf32>
    %5 = vector.shape_cast %4 : vector<1x1x32xf32> to vector<1x32xf32>
    %c0_5 = arith.constant 0 : index
    %c0_6 = arith.constant 0 : index
    %c0_7 = arith.constant 0 : index
    %6 = vector.load %arg6[%c0_5, %c0_6, %c0_7] : memref<1x1x32xf32, #tpu.memory_space<vmem>>, vector<1x1x32xf32>
    %7 = vector.shape_cast %6 : vector<1x1x32xf32> to vector<1x32xf32>
    %cst = arith.constant dense<0.000000e+00> : vector<16xf32>
    %8 = vector.multi_reduction <add>, %3, %cst [1] : vector<16x32xf32> to vector<16xf32>
    %9 = vector.shape_cast %8 : vector<16xf32> to vector<16x1xf32>
    %cst_8 = arith.constant 3.200000e+01 : f32
    %10 = vector.broadcast %cst_8 : f32 to vector<16x1xf32>
    %11 = arith.divf %9, %10 : vector<16x1xf32>
    %12 = vector.broadcast %11 : vector<16x1xf32> to vector<16x32xf32>
    %13 = arith.subf %3, %12 : vector<16x32xf32>
    %14 = arith.mulf %13, %13 : vector<16x32xf32>
    %cst_9 = arith.constant dense<0.000000e+00> : vector<16xf32>
    %15 = vector.multi_reduction <add>, %14, %cst_9 [1] : vector<16x32xf32> to vector<16xf32>
    %16 = vector.shape_cast %15 : vector<16xf32> to vector<16x1xf32>
    %cst_10 = arith.constant 3.200000e+01 : f32
    %17 = vector.broadcast %cst_10 : f32 to vector<16x1xf32>
    %18 = arith.divf %16, %17 : vector<16x1xf32>
    %19 = vector.broadcast %11 : vector<16x1xf32> to vector<16x32xf32>
    %20 = arith.subf %3, %19 : vector<16x32xf32>
    %cst_11 = arith.constant 9.99999974E-6 : f32
    %21 = vector.broadcast %cst_11 : f32 to vector<16x1xf32>
    %22 = arith.addf %18, %21 : vector<16x1xf32>
    %23 = math.rsqrt %22 : vector<16x1xf32>
    %24 = vector.broadcast %23 : vector<16x1xf32> to vector<16x32xf32>
    %25 = arith.mulf %20, %24 : vector<16x32xf32>
    %26 = vector.broadcast %5 : vector<1x32xf32> to vector<16x32xf32>
    %27 = arith.mulf %25, %26 : vector<16x32xf32>
    %28 = vector.broadcast %7 : vector<1x32xf32> to vector<16x32xf32>
    %29 = arith.addf %27, %28 : vector<16x32xf32>
    %30 = arith.truncf %29 : vector<16x32xf32> to vector<16x32xbf16>
    %c0_12 = arith.constant 0 : index
    %c0_13 = arith.constant 0 : index
    %c0_14 = arith.constant 0 : index
    %31 = vector.load %arg7[%c0_12, %c0_13, %c0_14] : memref<1x32x96xbf16, #tpu.memory_space<vmem>>, vector<1x32x96xbf16>
    %32 = vector.shape_cast %31 : vector<1x32x96xbf16> to vector<32x96xbf16>
    %cst_15 = arith.constant dense<0.000000e+00> : vector<16x96xf32>
    %33 = tpu.matmul %30, %32, %cst_15 {dimension_numbers = #tpu.dot_dimension_numbers<[1], [0], [0], [1], [0, 0, 1, 1], [], []>} : vector<16x32xbf16>, vector<32x96xbf16>, vector<16x96xf32> -> vector<16x96xf32>
    %c0_16 = arith.constant 0 : index
    %c0_17 = arith.constant 0 : index
    %c0_18 = arith.constant 0 : index
    %34 = vector.load %arg8[%c0_16, %c0_17, %c0_18] : memref<1x1x96xf32, #tpu.memory_space<vmem>>, vector<1x1x96xf32>
    %35 = vector.shape_cast %34 : vector<1x1x96xf32> to vector<1x96xf32>
    %36 = vector.broadcast %35 : vector<1x96xf32> to vector<16x96xf32>
    %37 = arith.addf %33, %36 : vector<16x96xf32>
    %cst_19 = arith.constant 0.000000e+00 : f32
    %38 = vector.broadcast %cst_19 : f32 to vector<16x32xf32>
    %39 = vector.extract_strided_slice %37 {offsets = [0, 0], sizes = [16, 8], strides = [1, 1]} : vector<16x96xf32> to vector<16x8xf32>
    %40 = vector.shape_cast %39 : vector<16x8xf32> to vector<2x8x8xf32>
    %41 = arith.truncf %40 : vector<2x8x8xf32> to vector<2x8x8xbf16>
    %42 = vector.extract_strided_slice %37 {offsets = [0, 32], sizes = [16, 8], strides = [1, 1]} : vector<16x96xf32> to vector<16x8xf32>
    %43 = vector.shape_cast %42 : vector<16x8xf32> to vector<2x8x8xf32>
    %44 = arith.truncf %43 : vector<2x8x8xf32> to vector<2x8x8xbf16>
    %45 = vector.extract_strided_slice %37 {offsets = [0, 64], sizes = [16, 8], strides = [1, 1]} : vector<16x96xf32> to vector<16x8xf32>
    %46 = vector.shape_cast %45 : vector<16x8xf32> to vector<2x8x8xf32>
    %47 = arith.truncf %46 : vector<2x8x8xf32> to vector<2x8x8xbf16>
    "tpu.trace_start"() <{level = 10 : i32, message = "bqd,bkd->bqk"}> : () -> ()
    %cst_20 = arith.constant dense<0.000000e+00> : vector<2x8x8xf32>
    %48 = tpu.matmul %41, %44, %cst_20 {dimension_numbers = #tpu.dot_dimension_numbers<[2], [2], [1], [1], [0, 0, 0, 1, 1, 1], [0], [0]>} : vector<2x8x8xbf16>, vector<2x8x8xbf16>, vector<2x8x8xf32> -> vector<2x8x8xf32>
    "tpu.trace_stop"() : () -> ()
    %cst_21 = arith.constant 0.353553385 : f32
    %49 = vector.broadcast %cst_21 : f32 to vector<2x8x8xf32>
    %50 = arith.mulf %48, %49 : vector<2x8x8xf32>
    %cst_22 = arith.constant dense<0xFF800000> : vector<2x8xf32>
    %51 = vector.multi_reduction <maximumf>, %50, %cst_22 [2] : vector<2x8x8xf32> to vector<2x8xf32>
    %52 = vector.shape_cast %51 : vector<2x8xf32> to vector<2x8x1xf32>
    %53 = vector.broadcast %52 : vector<2x8x1xf32> to vector<2x8x8xf32>
    %54 = arith.subf %50, %53 : vector<2x8x8xf32>
    %55 = math.exp %54 : vector<2x8x8xf32>
    %cst_23 = arith.constant dense<0.000000e+00> : vector<2x8xf32>
    %56 = vector.multi_reduction <add>, %55, %cst_23 [2] : vector<2x8x8xf32> to vector<2x8xf32>
    %57 = vector.shape_cast %56 : vector<2x8xf32> to vector<2x8x1xf32>
    %58 = tpu.reciprocal %57 {approx = true} : vector<2x8x1xf32> -> vector<2x8x1xf32>
    %59 = vector.broadcast %58 : vector<2x8x1xf32> to vector<2x8x8xf32>
    %60 = arith.mulf %55, %59 : vector<2x8x8xf32>
    %61 = arith.truncf %60 : vector<2x8x8xf32> to vector<2x8x8xbf16>
    "tpu.trace_start"() <{level = 10 : i32, message = "bqk,bkd->bqd"}> : () -> ()
    %cst_24 = arith.constant dense<0.000000e+00> : vector<2x8x8xf32>
    %62 = tpu.matmul %61, %47, %cst_24 {dimension_numbers = #tpu.dot_dimension_numbers<[2], [1], [1], [2], [0, 0, 0, 1, 1, 2], [0], [0]>} : vector<2x8x8xbf16>, vector<2x8x8xbf16>, vector<2x8x8xf32> -> vector<2x8x8xf32>
    "tpu.trace_stop"() : () -> ()
    %63 = vector.shape_cast %62 : vector<2x8x8xf32> to vector<16x8xf32>
    %64 = arith.truncf %63 : vector<16x8xf32> to vector<16x8xbf16>
    %c0_25 = arith.constant 0 : index
    %c0_26 = arith.constant 0 : index
    %c0_27 = arith.constant 0 : index
    %c0_28 = arith.constant 0 : index
    %65 = vector.load %arg9[%c0_25, %c0_26, %c0_27, %c0_28] : memref<1x4x8x32xbf16, #tpu.memory_space<vmem>>, vector<1x1x8x32xbf16>
    %66 = vector.shape_cast %65 : vector<1x1x8x32xbf16> to vector<8x32xbf16>
    %cst_29 = arith.constant dense<0.000000e+00> : vector<16x32xf32>
    %67 = tpu.matmul %64, %66, %cst_29 {dimension_numbers = #tpu.dot_dimension_numbers<[1], [0], [0], [1], [0, 0, 1, 1], [], []>} : vector<16x8xbf16>, vector<8x32xbf16>, vector<16x32xf32> -> vector<16x32xf32>
    %68 = arith.addf %38, %67 : vector<16x32xf32>
    %69 = vector.extract_strided_slice %37 {offsets = [0, 8], sizes = [16, 8], strides = [1, 1]} : vector<16x96xf32> to vector<16x8xf32>
    %70 = vector.shape_cast %69 : vector<16x8xf32> to vector<2x8x8xf32>
    %71 = arith.truncf %70 : vector<2x8x8xf32> to vector<2x8x8xbf16>
    %72 = vector.extract_strided_slice %37 {offsets = [0, 40], sizes = [16, 8], strides = [1, 1]} : vector<16x96xf32> to vector<16x8xf32>
    %73 = vector.shape_cast %72 : vector<16x8xf32> to vector<2x8x8xf32>
    %74 = arith.truncf %73 : vector<2x8x8xf32> to vector<2x8x8xbf16>
    %75 = vector.extract_strided_slice %37 {offsets = [0, 72], sizes = [16, 8], strides = [1, 1]} : vector<16x96xf32> to vector<16x8xf32>
    %76 = vector.shape_cast %75 : vector<16x8xf32> to vector<2x8x8xf32>
    %77 = arith.truncf %76 : vector<2x8x8xf32> to vector<2x8x8xbf16>
    "tpu.trace_start"() <{level = 10 : i32, message = "bqd,bkd->bqk"}> : () -> ()
    %cst_30 = arith.constant dense<0.000000e+00> : vector<2x8x8xf32>
    %78 = tpu.matmul %71, %74, %cst_30 {dimension_numbers = #tpu.dot_dimension_numbers<[2], [2], [1], [1], [0, 0, 0, 1, 1, 1], [0], [0]>} : vector<2x8x8xbf16>, vector<2x8x8xbf16>, vector<2x8x8xf32> -> vector<2x8x8xf32>
    "tpu.trace_stop"() : () -> ()
    %cst_31 = arith.constant 0.353553385 : f32
    %79 = vector.broadcast %cst_31 : f32 to vector<2x8x8xf32>
    %80 = arith.mulf %78, %79 : vector<2x8x8xf32>
    %cst_32 = arith.constant dense<0xFF800000> : vector<2x8xf32>
    %81 = vector.multi_reduction <maximumf>, %80, %cst_32 [2] : vector<2x8x8xf32> to vector<2x8xf32>
    %82 = vector.shape_cast %81 : vector<2x8xf32> to vector<2x8x1xf32>
    %83 = vector.broadcast %82 : vector<2x8x1xf32> to vector<2x8x8xf32>
    %84 = arith.subf %80, %83 : vector<2x8x8xf32>
    %85 = math.exp %84 : vector<2x8x8xf32>
    %cst_33 = arith.constant dense<0.000000e+00> : vector<2x8xf32>
    %86 = vector.multi_reduction <add>, %85, %cst_33 [2] : vector<2x8x8xf32> to vector<2x8xf32>
    %87 = vector.shape_cast %86 : vector<2x8xf32> to vector<2x8x1xf32>
    %88 = tpu.reciprocal %87 {approx = true} : vector<2x8x1xf32> -> vector<2x8x1xf32>
    %89 = vector.broadcast %88 : vector<2x8x1xf32> to vector<2x8x8xf32>
    %90 = arith.mulf %85, %89 : vector<2x8x8xf32>
    %91 = arith.truncf %90 : vector<2x8x8xf32> to vector<2x8x8xbf16>
    "tpu.trace_start"() <{level = 10 : i32, message = "bqk,bkd->bqd"}> : () -> ()
    %cst_34 = arith.constant dense<0.000000e+00> : vector<2x8x8xf32>
    %92 = tpu.matmul %91, %77, %cst_34 {dimension_numbers = #tpu.dot_dimension_numbers<[2], [1], [1], [2], [0, 0, 0, 1, 1, 2], [0], [0]>} : vector<2x8x8xbf16>, vector<2x8x8xbf16>, vector<2x8x8xf32> -> vector<2x8x8xf32>
    "tpu.trace_stop"() : () -> ()
    %93 = vector.shape_cast %92 : vector<2x8x8xf32> to vector<16x8xf32>
    %94 = arith.truncf %93 : vector<16x8xf32> to vector<16x8xbf16>
    %c0_35 = arith.constant 0 : index
    %c1 = arith.constant 1 : index
    %c0_36 = arith.constant 0 : index
    %c0_37 = arith.constant 0 : index
    %95 = vector.load %arg9[%c0_35, %c1, %c0_36, %c0_37] : memref<1x4x8x32xbf16, #tpu.memory_space<vmem>>, vector<1x1x8x32xbf16>
    %96 = vector.shape_cast %95 : vector<1x1x8x32xbf16> to vector<8x32xbf16>
    %cst_38 = arith.constant dense<0.000000e+00> : vector<16x32xf32>
    %97 = tpu.matmul %94, %96, %cst_38 {dimension_numbers = #tpu.dot_dimension_numbers<[1], [0], [0], [1], [0, 0, 1, 1], [], []>} : vector<16x8xbf16>, vector<8x32xbf16>, vector<16x32xf32> -> vector<16x32xf32>
    %98 = arith.addf %68, %97 : vector<16x32xf32>
    %99 = vector.extract_strided_slice %37 {offsets = [0, 16], sizes = [16, 8], strides = [1, 1]} : vector<16x96xf32> to vector<16x8xf32>
    %100 = vector.shape_cast %99 : vector<16x8xf32> to vector<2x8x8xf32>
    %101 = arith.truncf %100 : vector<2x8x8xf32> to vector<2x8x8xbf16>
    %102 = vector.extract_strided_slice %37 {offsets = [0, 48], sizes = [16, 8], strides = [1, 1]} : vector<16x96xf32> to vector<16x8xf32>
    %103 = vector.shape_cast %102 : vector<16x8xf32> to vector<2x8x8xf32>
    %104 = arith.truncf %103 : vector<2x8x8xf32> to vector<2x8x8xbf16>
    %105 = vector.extract_strided_slice %37 {offsets = [0, 80], sizes = [16, 8], strides = [1, 1]} : vector<16x96xf32> to vector<16x8xf32>
    %106 = vector.shape_cast %105 : vector<16x8xf32> to vector<2x8x8xf32>
    %107 = arith.truncf %106 : vector<2x8x8xf32> to vector<2x8x8xbf16>
    "tpu.trace_start"() <{level = 10 : i32, message = "bqd,bkd->bqk"}> : () -> ()
    %cst_39 = arith.constant dense<0.000000e+00> : vector<2x8x8xf32>
    %108 = tpu.matmul %101, %104, %cst_39 {dimension_numbers = #tpu.dot_dimension_numbers<[2], [2], [1], [1], [0, 0, 0, 1, 1, 1], [0], [0]>} : vector<2x8x8xbf16>, vector<2x8x8xbf16>, vector<2x8x8xf32> -> vector<2x8x8xf32>
    "tpu.trace_stop"() : () -> ()
    %cst_40 = arith.constant 0.353553385 : f32
    %109 = vector.broadcast %cst_40 : f32 to vector<2x8x8xf32>
    %110 = arith.mulf %108, %109 : vector<2x8x8xf32>
    %cst_41 = arith.constant dense<0xFF800000> : vector<2x8xf32>
    %111 = vector.multi_reduction <maximumf>, %110, %cst_41 [2] : vector<2x8x8xf32> to vector<2x8xf32>
    %112 = vector.shape_cast %111 : vector<2x8xf32> to vector<2x8x1xf32>
    %113 = vector.broadcast %112 : vector<2x8x1xf32> to vector<2x8x8xf32>
    %114 = arith.subf %110, %113 : vector<2x8x8xf32>
    %115 = math.exp %114 : vector<2x8x8xf32>
    %cst_42 = arith.constant dense<0.000000e+00> : vector<2x8xf32>
    %116 = vector.multi_reduction <add>, %115, %cst_42 [2] : vector<2x8x8xf32> to vector<2x8xf32>
    %117 = vector.shape_cast %116 : vector<2x8xf32> to vector<2x8x1xf32>
    %118 = tpu.reciprocal %117 {approx = true} : vector<2x8x1xf32> -> vector<2x8x1xf32>
    %119 = vector.broadcast %118 : vector<2x8x1xf32> to vector<2x8x8xf32>
    %120 = arith.mulf %115, %119 : vector<2x8x8xf32>
    %121 = arith.truncf %120 : vector<2x8x8xf32> to vector<2x8x8xbf16>
    "tpu.trace_start"() <{level = 10 : i32, message = "bqk,bkd->bqd"}> : () -> ()
    %cst_43 = arith.constant dense<0.000000e+00> : vector<2x8x8xf32>
    %122 = tpu.matmul %121, %107, %cst_43 {dimension_numbers = #tpu.dot_dimension_numbers<[2], [1], [1], [2], [0, 0, 0, 1, 1, 2], [0], [0]>} : vector<2x8x8xbf16>, vector<2x8x8xbf16>, vector<2x8x8xf32> -> vector<2x8x8xf32>
    "tpu.trace_stop"() : () -> ()
    %123 = vector.shape_cast %122 : vector<2x8x8xf32> to vector<16x8xf32>
    %124 = arith.truncf %123 : vector<16x8xf32> to vector<16x8xbf16>
    %c0_44 = arith.constant 0 : index
    %c2 = arith.constant 2 : index
    %c0_45 = arith.constant 0 : index
    %c0_46 = arith.constant 0 : index
    %125 = vector.load %arg9[%c0_44, %c2, %c0_45, %c0_46] : memref<1x4x8x32xbf16, #tpu.memory_space<vmem>>, vector<1x1x8x32xbf16>
    %126 = vector.shape_cast %125 : vector<1x1x8x32xbf16> to vector<8x32xbf16>
    %cst_47 = arith.constant dense<0.000000e+00> : vector<16x32xf32>
    %127 = tpu.matmul %124, %126, %cst_47 {dimension_numbers = #tpu.dot_dimension_numbers<[1], [0], [0], [1], [0, 0, 1, 1], [], []>} : vector<16x8xbf16>, vector<8x32xbf16>, vector<16x32xf32> -> vector<16x32xf32>
    %128 = arith.addf %98, %127 : vector<16x32xf32>
    %129 = vector.extract_strided_slice %37 {offsets = [0, 24], sizes = [16, 8], strides = [1, 1]} : vector<16x96xf32> to vector<16x8xf32>
    %130 = vector.shape_cast %129 : vector<16x8xf32> to vector<2x8x8xf32>
    %131 = arith.truncf %130 : vector<2x8x8xf32> to vector<2x8x8xbf16>
    %132 = vector.extract_strided_slice %37 {offsets = [0, 56], sizes = [16, 8], strides = [1, 1]} : vector<16x96xf32> to vector<16x8xf32>
    %133 = vector.shape_cast %132 : vector<16x8xf32> to vector<2x8x8xf32>
    %134 = arith.truncf %133 : vector<2x8x8xf32> to vector<2x8x8xbf16>
    %135 = vector.extract_strided_slice %37 {offsets = [0, 88], sizes = [16, 8], strides = [1, 1]} : vector<16x96xf32> to vector<16x8xf32>
    %136 = vector.shape_cast %135 : vector<16x8xf32> to vector<2x8x8xf32>
    %137 = arith.truncf %136 : vector<2x8x8xf32> to vector<2x8x8xbf16>
    "tpu.trace_start"() <{level = 10 : i32, message = "bqd,bkd->bqk"}> : () -> ()
    %cst_48 = arith.constant dense<0.000000e+00> : vector<2x8x8xf32>
    %138 = tpu.matmul %131, %134, %cst_48 {dimension_numbers = #tpu.dot_dimension_numbers<[2], [2], [1], [1], [0, 0, 0, 1, 1, 1], [0], [0]>} : vector<2x8x8xbf16>, vector<2x8x8xbf16>, vector<2x8x8xf32> -> vector<2x8x8xf32>
    "tpu.trace_stop"() : () -> ()
    %cst_49 = arith.constant 0.353553385 : f32
    %139 = vector.broadcast %cst_49 : f32 to vector<2x8x8xf32>
    %140 = arith.mulf %138, %139 : vector<2x8x8xf32>
    %cst_50 = arith.constant dense<0xFF800000> : vector<2x8xf32>
    %141 = vector.multi_reduction <maximumf>, %140, %cst_50 [2] : vector<2x8x8xf32> to vector<2x8xf32>
    %142 = vector.shape_cast %141 : vector<2x8xf32> to vector<2x8x1xf32>
    %143 = vector.broadcast %142 : vector<2x8x1xf32> to vector<2x8x8xf32>
    %144 = arith.subf %140, %143 : vector<2x8x8xf32>
    %145 = math.exp %144 : vector<2x8x8xf32>
    %cst_51 = arith.constant dense<0.000000e+00> : vector<2x8xf32>
    %146 = vector.multi_reduction <add>, %145, %cst_51 [2] : vector<2x8x8xf32> to vector<2x8xf32>
    %147 = vector.shape_cast %146 : vector<2x8xf32> to vector<2x8x1xf32>
    %148 = tpu.reciprocal %147 {approx = true} : vector<2x8x1xf32> -> vector<2x8x1xf32>
    %149 = vector.broadcast %148 : vector<2x8x1xf32> to vector<2x8x8xf32>
    %150 = arith.mulf %145, %149 : vector<2x8x8xf32>
    %151 = arith.truncf %150 : vector<2x8x8xf32> to vector<2x8x8xbf16>
    "tpu.trace_start"() <{level = 10 : i32, message = "bqk,bkd->bqd"}> : () -> ()
    %cst_52 = arith.constant dense<0.000000e+00> : vector<2x8x8xf32>
    %152 = tpu.matmul %151, %137, %cst_52 {dimension_numbers = #tpu.dot_dimension_numbers<[2], [1], [1], [2], [0, 0, 0, 1, 1, 2], [0], [0]>} : vector<2x8x8xbf16>, vector<2x8x8xbf16>, vector<2x8x8xf32> -> vector<2x8x8xf32>
    "tpu.trace_stop"() : () -> ()
    %153 = vector.shape_cast %152 : vector<2x8x8xf32> to vector<16x8xf32>
    %154 = arith.truncf %153 : vector<16x8xf32> to vector<16x8xbf16>
    %c0_53 = arith.constant 0 : index
    %c3 = arith.constant 3 : index
    %c0_54 = arith.constant 0 : index
    %c0_55 = arith.constant 0 : index
    %155 = vector.load %arg9[%c0_53, %c3, %c0_54, %c0_55] : memref<1x4x8x32xbf16, #tpu.memory_space<vmem>>, vector<1x1x8x32xbf16>
    %156 = vector.shape_cast %155 : vector<1x1x8x32xbf16> to vector<8x32xbf16>
    %cst_56 = arith.constant dense<0.000000e+00> : vector<16x32xf32>
    %157 = tpu.matmul %154, %156, %cst_56 {dimension_numbers = #tpu.dot_dimension_numbers<[1], [0], [0], [1], [0, 0, 1, 1], [], []>} : vector<16x8xbf16>, vector<8x32xbf16>, vector<16x32xf32> -> vector<16x32xf32>
    %158 = arith.addf %128, %157 : vector<16x32xf32>
    %159 = arith.addf %3, %158 : vector<16x32xf32>
    %c0_57 = arith.constant 0 : index
    %c0_58 = arith.constant 0 : index
    %c0_59 = arith.constant 0 : index
    %160 = vector.load %arg10[%c0_57, %c0_58, %c0_59] : memref<1x1x32xf32, #tpu.memory_space<vmem>>, vector<1x1x32xf32>
    %161 = vector.shape_cast %160 : vector<1x1x32xf32> to vector<1x32xf32>
    %162 = vector.broadcast %161 : vector<1x32xf32> to vector<16x32xf32>
    %163 = arith.addf %159, %162 : vector<16x32xf32>
    %c0_60 = arith.constant 0 : index
    %c0_61 = arith.constant 0 : index
    %c0_62 = arith.constant 0 : index
    %164 = vector.load %arg11[%c0_60, %c0_61, %c0_62] : memref<1x1x32xf32, #tpu.memory_space<vmem>>, vector<1x1x32xf32>
    %165 = vector.shape_cast %164 : vector<1x1x32xf32> to vector<1x32xf32>
    %c0_63 = arith.constant 0 : index
    %c0_64 = arith.constant 0 : index
    %c0_65 = arith.constant 0 : index
    %166 = vector.load %arg12[%c0_63, %c0_64, %c0_65] : memref<1x1x32xf32, #tpu.memory_space<vmem>>, vector<1x1x32xf32>
    %167 = vector.shape_cast %166 : vector<1x1x32xf32> to vector<1x32xf32>
    %cst_66 = arith.constant dense<0.000000e+00> : vector<16xf32>
    %168 = vector.multi_reduction <add>, %163, %cst_66 [1] : vector<16x32xf32> to vector<16xf32>
    %169 = vector.shape_cast %168 : vector<16xf32> to vector<16x1xf32>
    %cst_67 = arith.constant 3.200000e+01 : f32
    %170 = vector.broadcast %cst_67 : f32 to vector<16x1xf32>
    %171 = arith.divf %169, %170 : vector<16x1xf32>
    %172 = vector.broadcast %171 : vector<16x1xf32> to vector<16x32xf32>
    %173 = arith.subf %163, %172 : vector<16x32xf32>
    %174 = arith.mulf %173, %173 : vector<16x32xf32>
    %cst_68 = arith.constant dense<0.000000e+00> : vector<16xf32>
    %175 = vector.multi_reduction <add>, %174, %cst_68 [1] : vector<16x32xf32> to vector<16xf32>
    %176 = vector.shape_cast %175 : vector<16xf32> to vector<16x1xf32>
    %cst_69 = arith.constant 3.200000e+01 : f32
    %177 = vector.broadcast %cst_69 : f32 to vector<16x1xf32>
    %178 = arith.divf %176, %177 : vector<16x1xf32>
    %179 = vector.broadcast %171 : vector<16x1xf32> to vector<16x32xf32>
    %180 = arith.subf %163, %179 : vector<16x32xf32>
    %cst_70 = arith.constant 9.99999974E-6 : f32
    %181 = vector.broadcast %cst_70 : f32 to vector<16x1xf32>
    %182 = arith.addf %178, %181 : vector<16x1xf32>
    %183 = math.rsqrt %182 : vector<16x1xf32>
    %184 = vector.broadcast %183 : vector<16x1xf32> to vector<16x32xf32>
    %185 = arith.mulf %180, %184 : vector<16x32xf32>
    %186 = vector.broadcast %165 : vector<1x32xf32> to vector<16x32xf32>
    %187 = arith.mulf %185, %186 : vector<16x32xf32>
    %188 = vector.broadcast %167 : vector<1x32xf32> to vector<16x32xf32>
    %189 = arith.addf %187, %188 : vector<16x32xf32>
    %190 = arith.truncf %189 : vector<16x32xf32> to vector<16x32xbf16>
    %c0_71 = arith.constant 0 : index
    %c0_72 = arith.constant 0 : index
    %c0_73 = arith.constant 0 : index
    %191 = vector.load %arg13[%c0_71, %c0_72, %c0_73] : memref<1x32x64xbf16, #tpu.memory_space<vmem>>, vector<1x32x64xbf16>
    %192 = vector.shape_cast %191 : vector<1x32x64xbf16> to vector<32x64xbf16>
    %cst_74 = arith.constant dense<0.000000e+00> : vector<16x64xf32>
    %193 = tpu.matmul %190, %192, %cst_74 {dimension_numbers = #tpu.dot_dimension_numbers<[1], [0], [0], [1], [0, 0, 1, 1], [], []>} : vector<16x32xbf16>, vector<32x64xbf16>, vector<16x64xf32> -> vector<16x64xf32>
    %c0_75 = arith.constant 0 : index
    %c0_76 = arith.constant 0 : index
    %c0_77 = arith.constant 0 : index
    %194 = vector.load %arg14[%c0_75, %c0_76, %c0_77] : memref<1x1x64xf32, #tpu.memory_space<vmem>>, vector<1x1x64xf32>
    %195 = vector.shape_cast %194 : vector<1x1x64xf32> to vector<1x64xf32>
    %196 = vector.broadcast %195 : vector<1x64xf32> to vector<16x64xf32>
    %197 = arith.addf %193, %196 : vector<16x64xf32>
    %cst_78 = arith.constant 0.000000e+00 : f32
    %198 = vector.broadcast %cst_78 : f32 to vector<16x64xf32>
    %199 = arith.maximumf %197, %198 : vector<16x64xf32>
    %200 = arith.truncf %199 : vector<16x64xf32> to vector<16x64xbf16>
    %c0_79 = arith.constant 0 : index
    %c0_80 = arith.constant 0 : index
    %c0_81 = arith.constant 0 : index
    %201 = vector.load %arg15[%c0_79, %c0_80, %c0_81] : memref<1x64x32xbf16, #tpu.memory_space<vmem>>, vector<1x64x32xbf16>
    %202 = vector.shape_cast %201 : vector<1x64x32xbf16> to vector<64x32xbf16>
    %cst_82 = arith.constant dense<0.000000e+00> : vector<16x32xf32>
    %203 = tpu.matmul %200, %202, %cst_82 {dimension_numbers = #tpu.dot_dimension_numbers<[1], [0], [0], [1], [0, 0, 1, 1], [], []>} : vector<16x64xbf16>, vector<64x32xbf16>, vector<16x32xf32> -> vector<16x32xf32>
    %c0_83 = arith.constant 0 : index
    %c0_84 = arith.constant 0 : index
    %c0_85 = arith.constant 0 : index
    %204 = vector.load %arg16[%c0_83, %c0_84, %c0_85] : memref<1x1x32xf32, #tpu.memory_space<vmem>>, vector<1x1x32xf32>
    %205 = vector.shape_cast %204 : vector<1x1x32xf32> to vector<1x32xf32>
    %206 = vector.broadcast %205 : vector<1x32xf32> to vector<16x32xf32>
    %207 = arith.addf %203, %206 : vector<16x32xf32>
    %208 = arith.addf %163, %207 : vector<16x32xf32>
    %c0_86 = arith.constant 0 : index
    %c0_87 = arith.constant 0 : index
    %209 = vector.load %arg20[%c0_86, %c0_87] : memref<16x32xf32, #tpu.memory_space<vmem>>, vector<16x32xf32>
    tpu.vector_store %arg20[%c0_86, %c0_87], %208 {strides = array<i32>} : memref<16x32xf32, #tpu.memory_space<vmem>>, vector<16x32xf32>,
    %c1_i32 = arith.constant 1 : i32
    %210 = arith.cmpi eq, %arg0, %c1_i32 : i32
    %211 = arith.extui %210 : i1 to i32
    %c0_i32_88 = arith.constant 0 : i32
    %212 = arith.cmpi ne, %211, %c0_i32_88 : i32
    scf.if %212 {
      %213 = arith.truncf %208 : vector<16x32xf32> to vector<16x32xbf16>
      %c0_89 = arith.constant 0 : index
      %c0_90 = arith.constant 0 : index
      %214 = vector.load %arg17[%c0_89, %c0_90] : memref<32x16xbf16, #tpu.memory_space<vmem>>, vector<32x16xbf16>
      %cst_91 = arith.constant dense<0.000000e+00> : vector<16x16xf32>
      %215 = tpu.matmul %213, %214, %cst_91 {dimension_numbers = #tpu.dot_dimension_numbers<[1], [0], [0], [1], [0, 0, 1, 1], [], []>} : vector<16x32xbf16>, vector<32x16xbf16>, vector<16x16xf32> -> vector<16x16xf32>
      %c0_92 = arith.constant 0 : index
      %c0_93 = arith.constant 0 : index
      %216 = vector.load %arg18[%c0_92, %c0_93] : memref<1x16xf32, #tpu.memory_space<vmem>>, vector<1x16xf32>
      %217 = vector.broadcast %216 : vector<1x16xf32> to vector<16x16xf32>
      %218 = arith.addf %215, %217 : vector<16x16xf32>
      %c0_94 = arith.constant 0 : index
      %c0_95 = arith.constant 0 : index
      %219 = vector.load %arg19[%c0_94, %c0_95] : memref<16x16xf32, #tpu.memory_space<vmem>>, vector<16x16xf32>
      tpu.vector_store %arg19[%c0_94, %c0_95], %218 {strides = array<i32>} : memref<16x16xf32, #tpu.memory_space<vmem>>, vector<16x16xf32>,
    } else {
    }
    return
  }
  func.func @transform_0(%arg0: i32) -> (i32, i32) {
    %c0_i32 = arith.constant 0 : i32
    %c0_i32_0 = arith.constant 0 : i32
    %c0_i32_1 = arith.constant 0 : i32
    return %c0_i32, %c0_i32_0 : i32, i32
  }
  func.func @transform_1(%arg0: i32) -> (i32, i32) {
    %c0_i32 = arith.constant 0 : i32
    %c0_i32_0 = arith.constant 0 : i32
    %c0_i32_1 = arith.constant 0 : i32
    return %c0_i32, %c0_i32_0 : i32, i32
  }
  func.func @transform_2(%arg0: i32) -> (i32, i32) {
    %c0_i32 = arith.constant 0 : i32
    %c0_i32_0 = arith.constant 0 : i32
    %c0_i32_1 = arith.constant 0 : i32
    return %c0_i32, %c0_i32_0 : i32, i32
  }
  func.func @transform_3(%arg0: i32) -> (i32, i32) {
    %c0_i32 = arith.constant 0 : i32
    %c0_i32_0 = arith.constant 0 : i32
    %c0_i32_1 = arith.constant 0 : i32
    return %c0_i32, %c0_i32_0 : i32, i32
  }
  func.func @transform_4(%arg0: i32) -> (i32, i32, i32) {
    %c0_i32 = arith.constant 0 : i32
    %c0_i32_0 = arith.constant 0 : i32
    %c0_i32_1 = arith.constant 0 : i32
    return %arg0, %c0_i32, %c0_i32_0 : i32, i32, i32
  }
  func.func @transform_5(%arg0: i32) -> (i32, i32, i32) {
    %c0_i32 = arith.constant 0 : i32
    %c0_i32_0 = arith.constant 0 : i32
    %c0_i32_1 = arith.constant 0 : i32
    return %arg0, %c0_i32, %c0_i32_0 : i32, i32, i32
  }
  func.func @transform_6(%arg0: i32) -> (i32, i32, i32) {
    %c0_i32 = arith.constant 0 : i32
    %c0_i32_0 = arith.constant 0 : i32
    %c0_i32_1 = arith.constant 0 : i32
    return %arg0, %c0_i32, %c0_i32_0 : i32, i32, i32
  }
  func.func @transform_7(%arg0: i32) -> (i32, i32, i32) {
    %c0_i32 = arith.constant 0 : i32
    %c0_i32_0 = arith.constant 0 : i32
    %c0_i32_1 = arith.constant 0 : i32
    return %arg0, %c0_i32, %c0_i32_0 : i32, i32, i32
  }
  func.func @transform_8(%arg0: i32) -> (i32, i32, i32, i32) {
    %c0_i32 = arith.constant 0 : i32
    %c0_i32_0 = arith.constant 0 : i32
    %c0_i32_1 = arith.constant 0 : i32
    %c0_i32_2 = arith.constant 0 : i32
    return %arg0, %c0_i32, %c0_i32_0, %c0_i32_1 : i32, i32, i32, i32
  }
  func.func @transform_9(%arg0: i32) -> (i32, i32, i32) {
    %c0_i32 = arith.constant 0 : i32
    %c0_i32_0 = arith.constant 0 : i32
    %c0_i32_1 = arith.constant 0 : i32
    return %arg0, %c0_i32, %c0_i32_0 : i32, i32, i32
  }
  func.func @transform_10(%arg0: i32) -> (i32, i32, i32) {
    %c0_i32 = arith.constant 0 : i32
    %c0_i32_0 = arith.constant 0 : i32
    %c0_i32_1 = arith.constant 0 : i32
    return %arg0, %c0_i32, %c0_i32_0 : i32, i32, i32
  }
  func.func @transform_11(%arg0: i32) -> (i32, i32, i32) {
    %c0_i32 = arith.constant 0 : i32
    %c0_i32_0 = arith.constant 0 : i32
    %c0_i32_1 = arith.constant 0 : i32
    return %arg0, %c0_i32, %c0_i32_0 : i32, i32, i32
  }
  func.func @transform_12(%arg0: i32) -> (i32, i32, i32) {
    %c0_i32 = arith.constant 0 : i32
    %c0_i32_0 = arith.constant 0 : i32
    %c0_i32_1 = arith.constant 0 : i32
    return %arg0, %c0_i32, %c0_i32_0 : i32, i32, i32
  }
  func.func @transform_13(%arg0: i32) -> (i32, i32, i32) {
    %c0_i32 = arith.constant 0 : i32
    %c0_i32_0 = arith.constant 0 : i32
    %c0_i32_1 = arith.constant 0 : i32
    return %arg0, %c0_i32, %c0_i32_0 : i32, i32, i32
  }
  func.func @transform_14(%arg0: i32) -> (i32, i32, i32) {
    %c0_i32 = arith.constant 0 : i32
    %c0_i32_0 = arith.constant 0 : i32
    %c0_i32_1 = arith.constant 0 : i32
    return %arg0, %c0_i32, %c0_i32_0 : i32, i32, i32
  }
  func.func @transform_15(%arg0: i32) -> (i32, i32, i32) {
    %c0_i32 = arith.constant 0 : i32
    %c0_i32_0 = arith.constant 0 : i32
    %c0_i32_1 = arith.constant 0 : i32
    return %arg0, %c0_i32, %c0_i32_0 : i32, i32, i32
  }
  func.func @transform_16(%arg0: i32) -> (i32, i32) {
    %c0_i32 = arith.constant 0 : i32
    %c0_i32_0 = arith.constant 0 : i32
    %c0_i32_1 = arith.constant 0 : i32
    return %c0_i32, %c0_i32_0 : i32, i32
  }
  func.func @transform_17(%arg0: i32) -> (i32, i32) {
    %c0_i32 = arith.constant 0 : i32
    %c0_i32_0 = arith.constant 0 : i32
    %c0_i32_1 = arith.constant 0 : i32
    return %c0_i32, %c0_i32_0 : i32, i32
  }
  func.func @transform_18(%arg0: i32) -> (i32, i32) {
    %c0_i32 = arith.constant 0 : i32
    %c0_i32_0 = arith.constant 0 : i32
    %c0_i32_1 = arith.constant 0 : i32
    return %c0_i32, %c0_i32_0 : i32, i32
  }
}

</mosaic_0001>

<llo_original>
// kernel: tpu_custom_call.1
$region0: #{tpu_custom_call.1}
  #allocation0 [shape = 'u32[]', space=smem, size = 0x4, offset = 0x4, fixed_abs, tag = 'smem constant byte address 0x4 - core index']
  #allocation1 [shape = 'u32[72,128]{1,0:T(1,128)}', space=vmem, size = 0x9000, scoped, tag = 'internal scratch']
  #allocation2 [shape = 'f32[16,32]{1,0:T(8,128)}', space=vmem, size = 0x2000, scoped, tag = 'scratch operand']
  %s0 = inlined_call_operand.hbm [shape: f32[16,16], index: 0, kind: input, shape index: {}]
  %s1 = inlined_call_operand.hbm [shape: f32[16,32], index: 1, kind: input, shape index: {}]
  %s2 = inlined_call_operand.hbm [shape: bf16[16,32], index: 2, kind: input, shape index: {}]
  %s3 = inlined_call_operand.vmem [shape: f32[1,32], index: 3, kind: input, shape index: {}]
  %s4 = inlined_call_operand.vmem [shape: f32[2,1,32], index: 4, kind: input, shape index: {}]
  %s5 = inlined_call_operand.vmem [shape: f32[2,1,32], index: 5, kind: input, shape index: {}]
  %s6 = inlined_call_operand.vmem [shape: bf16[2,32,96], index: 6, kind: input, shape index: {}]
  %s7 = inlined_call_operand.hbm [shape: f32[2,1,96], index: 7, kind: input, shape index: {}]
  %s8 = inlined_call_operand.vmem [shape: bf16[2,4,8,32], index: 8, kind: input, shape index: {}]
  %s9 = inlined_call_operand.hbm [shape: f32[2,1,32], index: 9, kind: input, shape index: {}]
  %s10 = inlined_call_operand.hbm [shape: f32[2,1,32], index: 10, kind: input, shape index: {}]
  %s11 = inlined_call_operand.hbm [shape: f32[2,1,32], index: 11, kind: input, shape index: {}]
  %s12 = inlined_call_operand.vmem [shape: bf16[2,32,64], index: 12, kind: input, shape index: {}]
  %s13 = inlined_call_operand.hbm [shape: f32[2,1,64], index: 13, kind: input, shape index: {}]
  %s14 = inlined_call_operand.vmem [shape: bf16[2,64,32], index: 14, kind: input, shape index: {}]
  %s15 = inlined_call_operand.hbm [shape: f32[2,1,32], index: 15, kind: input, shape index: {}]
  %s16 = inlined_call_operand.vmem [shape: bf16[32,16], index: 16, kind: input, shape index: {}]
  %s17 = inlined_call_operand.vmem [shape: f32[1,16], index: 17, kind: input, shape index: {}]
  %s18 = inlined_call_operand.hbm [shape: f32[16,16], index: 18, kind: output, shape index: {}]
  %s19 = sld [smem:[#allocation0]]
  $region149: #{tpu_custom_call.1} parent=0
    _
  %s21 = ssub.s32 1, %s19
  %s22 = scalar_select 0, %s21, %s19
  $region1: #{tpu_custom_call.1} parent=0
    #allocation3 [shape = 'u8[8192]{0}', space=vmem, size = 0x2000, scoped, tag = 'input window, operand 0, single buffered']
    #allocation4 [shape = 's32[2]{0}', space=sflag, size = 0x8, scoped, tag = 'scoped memory for tpu_custom_call.1']
    #allocation5 [shape = 's32[2]{0}', space=sflag, size = 0x8, scoped, tag = 'scoped memory for tpu_custom_call.1']
    #allocation6 [shape = 'u8[8192]{0}', space=vmem, size = 0x2000, scoped, tag = 'input window, operand 1, single buffered']
    #allocation7 [shape = 's32[1]{0}', space=sflag, size = 0x4, scoped, tag = 'scoped memory for tpu_custom_call.1']
    #allocation8 [shape = 'u8[4096]{0}', space=vmem, size = 0x1000, scoped, tag = 'input window, operand 2, single buffered']
    #allocation9 [shape = 'u8[1024]{0}', space=vmem, size = 0x400, scoped, tag = 'input window, operand 7']
    #allocation10 [shape = 's32[2]{0}', space=sflag, size = 0x8, scoped, tag = 'scoped memory for tpu_custom_call.1']
    #allocation11 [shape = 'u8[1024]{0}', space=vmem, size = 0x400, scoped, tag = 'input window, operand 9']
    #allocation12 [shape = 'u8[1024]{0}', space=vmem, size = 0x400, scoped, tag = 'input window, operand 10']
    #allocation13 [shape = 's32[2]{0}', space=sflag, size = 0x8, scoped, tag = 'scoped memory for tpu_custom_call.1']
    #allocation14 [shape = 'u8[1024]{0}', space=vmem, size = 0x400, scoped, tag = 'input window, operand 11']
    #allocation15 [shape = 'u8[1024]{0}', space=vmem, size = 0x400, scoped, tag = 'input window, operand 13']
    #allocation16 [shape = 's32[2]{0}', space=sflag, size = 0x8, scoped, tag = 'scoped memory for tpu_custom_call.1']
    #allocation17 [shape = 'u8[1024]{0}', space=vmem, size = 0x400, scoped, tag = 'input window, operand 15']
    #allocation18 [shape = 'u8[8192]{0}', space=vmem, size = 0x2000, scoped, tag = 'output window, operand 0, single buffered']
    %23 = vsyncpa [#allocation4], 0
    %24 = vsyncpa [#allocation7], 0
    %25 = vsyncpa [#allocation10], 0
    %s26 = scalar_lea.sflag [#allocation10], 1
    %27 = vsyncpa %s26, 0
    %28 = vsyncpa [#allocation13], 0
    %s29 = scalar_lea.sflag [#allocation13], 1
    %30 = vsyncpa %s29, 0
    %31 = vsyncpa [#allocation16], 0
    %s32 = scalar_lea.sflag [#allocation16], 1
    %33 = vsyncpa %s32, 0
    %34 = vsyncpa [#allocation5], 0
    loop: start=0, step=1, limit=4
    $region2: #{tpu_custom_call.1} parent=1 // loop_pre_header
      _
    $region3: #{tpu_custom_call.1} parent=1 // loop_header
      %s36 = sphi 0, %s40
      %p37 = scmp.ge.s32.totalorder %s36, 4
      %s44 = sphi 0, %s44
      %s46 = sphi 0, %s44
      %s47 = sphi 0, %s46
      %s61 = sphi 0, %s47
      %s65 = sphi 0, %s65
      %s67 = sphi 0, %s65
      %s68 = sphi 0, %s67
      %s82 = sphi 0, %s68
      %s86 = sphi 0, %s86
      %s88 = sphi 0, %s86
      %s89 = sphi 0, %s88
      %s103 = sphi 0, %s89
      %s107 = sphi 0, %s107
      %s109 = sphi 0, %s107
      %s110 = sphi 0, %s109
      %s124 = sphi 0, %s110
      %s130 = sphi 0, %s132
      %s133 = sphi 0, %s130
      %s134 = sphi 0, %s133
      %s150 = sphi 0, %s134
      %s156 = sphi 0, %s158
      %s159 = sphi 0, %s156
      %s160 = sphi 0, %s159
      %s176 = sphi 0, %s160
      %s182 = sphi 0, %s184
      %s185 = sphi 0, %s182
      %s186 = sphi 0, %s185
      %s202 = sphi 0, %s186
      %s208 = sphi 0, %s210
      %s211 = sphi 0, %s208
      %s212 = sphi 0, %s211
      %s228 = sphi 0, %s212
      %s234 = sphi 0, %s236
      %s237 = sphi 0, %s234
      %s238 = sphi 0, %s237
      %s254 = sphi 0, %s238
      %s260 = sphi 0, %s262
      %s263 = sphi 0, %s260
      %s264 = sphi 0, %s263
      %s280 = sphi 0, %s264
      %s286 = sphi 0, %s288
      %s289 = sphi 0, %s286
      %s290 = sphi 0, %s289
      %s306 = sphi 0, %s290
      %s312 = sphi 0, %s314
      %s315 = sphi 0, %s312
      %s316 = sphi 0, %s315
      %s332 = sphi 0, %s316
      %s338 = sphi 0, %s340
      %s341 = sphi 0, %s338
      %s342 = sphi 0, %s341
      %s358 = sphi 0, %s342
      %s364 = sphi 0, %s366
      %s367 = sphi 0, %s364
      %s368 = sphi 0, %s367
      %s384 = sphi 0, %s368
      %s390 = sphi 0, %s392
      %s393 = sphi 0, %s390
      %s394 = sphi 0, %s393
      %s410 = sphi 0, %s394
      %s416 = sphi 0, %s418
      %s419 = sphi 0, %s416
      %s420 = sphi 0, %s419
      %s436 = sphi 0, %s420
      %s440 = sphi 0, %s440
      %s442 = sphi 0, %s440
      %s443 = sphi 0, %s442
      %s457 = sphi 0, %s443
      %s461 = sphi 0, %s461
      %s463 = sphi 0, %s461
      %s464 = sphi 0, %s463
      %s478 = sphi 0, %s464
      %s482 = sphi 0, %s482
      %s484 = sphi 0, %s482
      %s485 = sphi 0, %s484
      %s499 = sphi 0, %s485
    $region4: #{tpu_custom_call.1} parent=1 // loop_header_branch
      %39 = sbr.rel (%p37) target = $region8
    $region5: #{tpu_custom_call.1} parent=1 // loop_body
      %s41 = ssub.s32 %s36, 1
      %s42 = ssub.s32 %s36, 2
      %s43 = sadd.s32 %s36, 1
      %s45 = sadd.s32 %s44, 1
      %p48 = scmp.eq.s32.totalorder %s36, 1
      %p49 = scmp.ne.s32.totalorder %s44, %s46
      %p50 = scmp.eq.s32.totalorder %s36, 0
      %p51 = por %p49, %p50
      %p52 = scmp.ne.s32.totalorder %s44, %s46
      %p53 = scmp.eq.s32.totalorder %s41, 1
      %p54 = por %p52, %p53
      %p55 = scmp.ne.s32.totalorder %s46, %s47
      %p56 = scmp.eq.s32.totalorder %s41, 0
      %p57 = por %p55, %p56
      %p58 = scmp.ne.s32.totalorder %s46, %s47
      %p59 = scmp.eq.s32.totalorder %s42, 1
      %p60 = por %p58, %p59
      %p62 = scmp.ne.s32.totalorder %s47, %s61
      %p63 = scmp.eq.s32.totalorder %s42, 0
      %p64 = por %p62, %p63
      %s66 = sadd.s32 %s65, 1
      %p69 = scmp.eq.s32.totalorder %s36, 1
      %p70 = scmp.ne.s32.totalorder %s65, %s67
      %p71 = scmp.eq.s32.totalorder %s36, 0
      %p72 = por %p70, %p71
      %p73 = scmp.ne.s32.totalorder %s65, %s67
      %p74 = scmp.eq.s32.totalorder %s41, 1
      %p75 = por %p73, %p74
      %p76 = scmp.ne.s32.totalorder %s67, %s68
      %p77 = scmp.eq.s32.totalorder %s41, 0
      %p78 = por %p76, %p77
      %p79 = scmp.ne.s32.totalorder %s67, %s68
      %p80 = scmp.eq.s32.totalorder %s42, 1
      %p81 = por %p79, %p80
      %p83 = scmp.ne.s32.totalorder %s68, %s82
      %p84 = scmp.eq.s32.totalorder %s42, 0
      %p85 = por %p83, %p84
      %s87 = sadd.s32 %s86, 1
      %p90 = scmp.eq.s32.totalorder %s36, 1
      %p91 = scmp.ne.s32.totalorder %s86, %s88
      %p92 = scmp.eq.s32.totalorder %s36, 0
      %p93 = por %p91, %p92
      %p94 = scmp.ne.s32.totalorder %s86, %s88
      %p95 = scmp.eq.s32.totalorder %s41, 1
      %p96 = por %p94, %p95
      %p97 = scmp.ne.s32.totalorder %s88, %s89
      %p98 = scmp.eq.s32.totalorder %s41, 0
      %p99 = por %p97, %p98
      %p100 = scmp.ne.s32.totalorder %s88, %s89
      %p101 = scmp.eq.s32.totalorder %s42, 1
      %p102 = por %p100, %p101
      %p104 = scmp.ne.s32.totalorder %s89, %s103
      %p105 = scmp.eq.s32.totalorder %s42, 0
      %p106 = por %p104, %p105
      %s108 = sadd.s32 %s107, 1
      %p111 = scmp.eq.s32.totalorder %s36, 1
      %p112 = scmp.ne.s32.totalorder %s107, %s109
      %p113 = scmp.eq.s32.totalorder %s36, 0
      %p114 = por %p112, %p113
      %p115 = scmp.ne.s32.totalorder %s107, %s109
      %p116 = scmp.eq.s32.totalorder %s41, 1
      %p117 = por %p115, %p116
      %p118 = scmp.ne.s32.totalorder %s109, %s110
      %p119 = scmp.eq.s32.totalorder %s41, 0
      %p120 = por %p118, %p119
      %p121 = scmp.ne.s32.totalorder %s109, %s110
      %p122 = scmp.eq.s32.totalorder %s42, 1
      %p123 = por %p121, %p122
      %p125 = scmp.ne.s32.totalorder %s110, %s124
      %p126 = scmp.eq.s32.totalorder %s42, 0
      %p127 = por %p125, %p126
      %s128 = ssub.s32 %s36, %s43
      %p129 = scmp.eq.s32.totalorder %s128, 0
      %s131 = sadd.s32 %s130, 1
      %s132 = scalar_select %p129, %s130, %s131
      %p135 = pneg %p129
      %p136 = scmp.eq.s32.totalorder %s36, 1
      %p137 = por %p135, %p136
      %p138 = scmp.ne.s32.totalorder %s130, %s133
      %p139 = scmp.eq.s32.totalorder %s36, 0
      %p140 = por %p138, %p139
      %p141 = scmp.ne.s32.totalorder %s130, %s133
      %p142 = scmp.eq.s32.totalorder %s41, 1
      %p143 = por %p141, %p142
      %p144 = scmp.ne.s32.totalorder %s133, %s134
      %p145 = scmp.eq.s32.totalorder %s41, 0
      %p146 = por %p144, %p145
      %p147 = scmp.ne.s32.totalorder %s133, %s134
      %p148 = scmp.eq.s32.totalorder %s42, 1
      %p149 = por %p147, %p148
      %p151 = scmp.ne.s32.totalorder %s134, %s150
      %p152 = scmp.eq.s32.totalorder %s42, 0
      %p153 = por %p151, %p152
      %s154 = ssub.s32 %s36, %s43
      %p155 = scmp.eq.s32.totalorder %s154, 0
      %s157 = sadd.s32 %s156, 1
      %s158 = scalar_select %p155, %s156, %s157
      %p161 = pneg %p155
      %p162 = scmp.eq.s32.totalorder %s36, 1
      %p163 = por %p161, %p162
      %p164 = scmp.ne.s32.totalorder %s156, %s159
      %p165 = scmp.eq.s32.totalorder %s36, 0
      %p166 = por %p164, %p165
      %p167 = scmp.ne.s32.totalorder %s156, %s159
      %p168 = scmp.eq.s32.totalorder %s41, 1
      %p169 = por %p167, %p168
      %p170 = scmp.ne.s32.totalorder %s159, %s160
      %p171 = scmp.eq.s32.totalorder %s41, 0
      %p172 = por %p170, %p171
      %p173 = scmp.ne.s32.totalorder %s159, %s160
      %p174 = scmp.eq.s32.totalorder %s42, 1
      %p175 = por %p173, %p174
      %p177 = scmp.ne.s32.totalorder %s160, %s176
      %p178 = scmp.eq.s32.totalorder %s42, 0
      %p179 = por %p177, %p178
      %s180 = ssub.s32 %s36, %s43
      %p181 = scmp.eq.s32.totalorder %s180, 0
      %s183 = sadd.s32 %s182, 1
      %s184 = scalar_select %p181, %s182, %s183
      %p187 = pneg %p181
      %p188 = scmp.eq.s32.totalorder %s36, 1
      %p189 = por %p187, %p188
      %p190 = scmp.ne.s32.totalorder %s182, %s185
      %p191 = scmp.eq.s32.totalorder %s36, 0
      %p192 = por %p190, %p191
      %p193 = scmp.ne.s32.totalorder %s182, %s185
      %p194 = scmp.eq.s32.totalorder %s41, 1
      %p195 = por %p193, %p194
      %p196 = scmp.ne.s32.totalorder %s185, %s186
      %p197 = scmp.eq.s32.totalorder %s41, 0
      %p198 = por %p196, %p197
      %p199 = scmp.ne.s32.totalorder %s185, %s186
      %p200 = scmp.eq.s32.totalorder %s42, 1
      %p201 = por %p199, %p200
      %p203 = scmp.ne.s32.totalorder %s186, %s202
      %p204 = scmp.eq.s32.totalorder %s42, 0
      %p205 = por %p203, %p204
      %s206 = ssub.s32 %s36, %s43
      %p207 = scmp.eq.s32.totalorder %s206, 0
      %s209 = sadd.s32 %s208, 1
      %s210 = scalar_select %p207, %s208, %s209
      %p213 = pneg %p207
      %p214 = scmp.eq.s32.totalorder %s36, 1
      %p215 = por %p213, %p214
      %p216 = scmp.ne.s32.totalorder %s208, %s211
      %p217 = scmp.eq.s32.totalorder %s36, 0
      %p218 = por %p216, %p217
      %p219 = scmp.ne.s32.totalorder %s208, %s211
      %p220 = scmp.eq.s32.totalorder %s41, 1
      %p221 = por %p219, %p220
      %p222 = scmp.ne.s32.totalorder %s211, %s212
      %p223 = scmp.eq.s32.totalorder %s41, 0
      %p224 = por %p222, %p223
      %p225 = scmp.ne.s32.totalorder %s211, %s212
      %p226 = scmp.eq.s32.totalorder %s42, 1
      %p227 = por %p225, %p226
      %p229 = scmp.ne.s32.totalorder %s212, %s228
      %p230 = scmp.eq.s32.totalorder %s42, 0
      %p231 = por %p229, %p230
      %s232 = ssub.s32 %s36, %s43
      %p233 = scmp.eq.s32.totalorder %s232, 0
      %s235 = sadd.s32 %s234, 1
      %s236 = scalar_select %p233, %s234, %s235
      %p239 = pneg %p233
      %p240 = scmp.eq.s32.totalorder %s36, 1
      %p241 = por %p239, %p240
      %p242 = scmp.ne.s32.totalorder %s234, %s237
      %p243 = scmp.eq.s32.totalorder %s36, 0
      %p244 = por %p242, %p243
      %p245 = scmp.ne.s32.totalorder %s234, %s237
      %p246 = scmp.eq.s32.totalorder %s41, 1
      %p247 = por %p245, %p246
      %p248 = scmp.ne.s32.totalorder %s237, %s238
      %p249 = scmp.eq.s32.totalorder %s41, 0
      %p250 = por %p248, %p249
      %p251 = scmp.ne.s32.totalorder %s237, %s238
      %p252 = scmp.eq.s32.totalorder %s42, 1
      %p253 = por %p251, %p252
      %p255 = scmp.ne.s32.totalorder %s238, %s254
      %p256 = scmp.eq.s32.totalorder %s42, 0
      %p257 = por %p255, %p256
      %s258 = ssub.s32 %s36, %s43
      %p259 = scmp.eq.s32.totalorder %s258, 0
      %s261 = sadd.s32 %s260, 1
      %s262 = scalar_select %p259, %s260, %s261
      %p265 = pneg %p259
      %p266 = scmp.eq.s32.totalorder %s36, 1
      %p267 = por %p265, %p266
      %p268 = scmp.ne.s32.totalorder %s260, %s263
      %p269 = scmp.eq.s32.totalorder %s36, 0
      %p270 = por %p268, %p269
      %p271 = scmp.ne.s32.totalorder %s260, %s263
      %p272 = scmp.eq.s32.totalorder %s41, 1
      %p273 = por %p271, %p272
      %p274 = scmp.ne.s32.totalorder %s263, %s264
      %p275 = scmp.eq.s32.totalorder %s41, 0
      %p276 = por %p274, %p275
      %p277 = scmp.ne.s32.totalorder %s263, %s264
      %p278 = scmp.eq.s32.totalorder %s42, 1
      %p279 = por %p277, %p278
      %p281 = scmp.ne.s32.totalorder %s264, %s280
      %p282 = scmp.eq.s32.totalorder %s42, 0
      %p283 = por %p281, %p282
      %s284 = ssub.s32 %s36, %s43
      %p285 = scmp.eq.s32.totalorder %s284, 0
      %s287 = sadd.s32 %s286, 1
      %s288 = scalar_select %p285, %s286, %s287
      %p291 = pneg %p285
      %p292 = scmp.eq.s32.totalorder %s36, 1
      %p293 = por %p291, %p292
      %p294 = scmp.ne.s32.totalorder %s286, %s289
      %p295 = scmp.eq.s32.totalorder %s36, 0
      %p296 = por %p294, %p295
      %p297 = scmp.ne.s32.totalorder %s286, %s289
      %p298 = scmp.eq.s32.totalorder %s41, 1
      %p299 = por %p297, %p298
      %p300 = scmp.ne.s32.totalorder %s289, %s290
      %p301 = scmp.eq.s32.totalorder %s41, 0
      %p302 = por %p300, %p301
      %p303 = scmp.ne.s32.totalorder %s289, %s290
      %p304 = scmp.eq.s32.totalorder %s42, 1
      %p305 = por %p303, %p304
      %p307 = scmp.ne.s32.totalorder %s290, %s306
      %p308 = scmp.eq.s32.totalorder %s42, 0
      %p309 = por %p307, %p308
      %s310 = ssub.s32 %s36, %s43
      %p311 = scmp.eq.s32.totalorder %s310, 0
      %s313 = sadd.s32 %s312, 1
      %s314 = scalar_select %p311, %s312, %s313
      %p317 = pneg %p311
      %p318 = scmp.eq.s32.totalorder %s36, 1
      %p319 = por %p317, %p318
      %p320 = scmp.ne.s32.totalorder %s312, %s315
      %p321 = scmp.eq.s32.totalorder %s36, 0
      %p322 = por %p320, %p321
      %p323 = scmp.ne.s32.totalorder %s312, %s315
      %p324 = scmp.eq.s32.totalorder %s41, 1
      %p325 = por %p323, %p324
      %p326 = scmp.ne.s32.totalorder %s315, %s316
      %p327 = scmp.eq.s32.totalorder %s41, 0
      %p328 = por %p326, %p327
      %p329 = scmp.ne.s32.totalorder %s315, %s316
      %p330 = scmp.eq.s32.totalorder %s42, 1
      %p331 = por %p329, %p330
      %p333 = scmp.ne.s32.totalorder %s316, %s332
      %p334 = scmp.eq.s32.totalorder %s42, 0
      %p335 = por %p333, %p334
      %s336 = ssub.s32 %s36, %s43
      %p337 = scmp.eq.s32.totalorder %s336, 0
      %s339 = sadd.s32 %s338, 1
      %s340 = scalar_select %p337, %s338, %s339
      %p343 = pneg %p337
      %p344 = scmp.eq.s32.totalorder %s36, 1
      %p345 = por %p343, %p344
      %p346 = scmp.ne.s32.totalorder %s338, %s341
      %p347 = scmp.eq.s32.totalorder %s36, 0
      %p348 = por %p346, %p347
      %p349 = scmp.ne.s32.totalorder %s338, %s341
      %p350 = scmp.eq.s32.totalorder %s41, 1
      %p351 = por %p349, %p350
      %p352 = scmp.ne.s32.totalorder %s341, %s342
      %p353 = scmp.eq.s32.totalorder %s41, 0
      %p354 = por %p352, %p353
      %p355 = scmp.ne.s32.totalorder %s341, %s342
      %p356 = scmp.eq.s32.totalorder %s42, 1
      %p357 = por %p355, %p356
      %p359 = scmp.ne.s32.totalorder %s342, %s358
      %p360 = scmp.eq.s32.totalorder %s42, 0
      %p361 = por %p359, %p360
      %s362 = ssub.s32 %s36, %s43
      %p363 = scmp.eq.s32.totalorder %s362, 0
      %s365 = sadd.s32 %s364, 1
      %s366 = scalar_select %p363, %s364, %s365
      %p369 = pneg %p363
      %p370 = scmp.eq.s32.totalorder %s36, 1
      %p371 = por %p369, %p370
      %p372 = scmp.ne.s32.totalorder %s364, %s367
      %p373 = scmp.eq.s32.totalorder %s36, 0
      %p374 = por %p372, %p373
      %p375 = scmp.ne.s32.totalorder %s364, %s367
      %p376 = scmp.eq.s32.totalorder %s41, 1
      %p377 = por %p375, %p376
      %p378 = scmp.ne.s32.totalorder %s367, %s368
      %p379 = scmp.eq.s32.totalorder %s41, 0
      %p380 = por %p378, %p379
      %p381 = scmp.ne.s32.totalorder %s367, %s368
      %p382 = scmp.eq.s32.totalorder %s42, 1
      %p383 = por %p381, %p382
      %p385 = scmp.ne.s32.totalorder %s368, %s384
      %p386 = scmp.eq.s32.totalorder %s42, 0
      %p387 = por %p385, %p386
      %s388 = ssub.s32 %s36, %s43
      %p389 = scmp.eq.s32.totalorder %s388, 0
      %s391 = sadd.s32 %s390, 1
      %s392 = scalar_select %p389, %s390, %s391
      %p395 = pneg %p389
      %p396 = scmp.eq.s32.totalorder %s36, 1
      %p397 = por %p395, %p396
      %p398 = scmp.ne.s32.totalorder %s390, %s393
      %p399 = scmp.eq.s32.totalorder %s36, 0
      %p400 = por %p398, %p399
      %p401 = scmp.ne.s32.totalorder %s390, %s393
      %p402 = scmp.eq.s32.totalorder %s41, 1
      %p403 = por %p401, %p402
      %p404 = scmp.ne.s32.totalorder %s393, %s394
      %p405 = scmp.eq.s32.totalorder %s41, 0
      %p406 = por %p404, %p405
      %p407 = scmp.ne.s32.totalorder %s393, %s394
      %p408 = scmp.eq.s32.totalorder %s42, 1
      %p409 = por %p407, %p408
      %p411 = scmp.ne.s32.totalorder %s394, %s410
      %p412 = scmp.eq.s32.totalorder %s42, 0
      %p413 = por %p411, %p412
      %s414 = ssub.s32 %s36, %s43
      %p415 = scmp.eq.s32.totalorder %s414, 0
      %s417 = sadd.s32 %s416, 1
      %s418 = scalar_select %p415, %s416, %s417
      %p421 = pneg %p415
      %p422 = scmp.eq.s32.totalorder %s36, 1
      %p423 = por %p421, %p422
      %p424 = scmp.ne.s32.totalorder %s416, %s419
      %p425 = scmp.eq.s32.totalorder %s36, 0
      %p426 = por %p424, %p425
      %p427 = scmp.ne.s32.totalorder %s416, %s419
      %p428 = scmp.eq.s32.totalorder %s41, 1
      %p429 = por %p427, %p428
      %p430 = scmp.ne.s32.totalorder %s419, %s420
      %p431 = scmp.eq.s32.totalorder %s41, 0
      %p432 = por %p430, %p431
      %p433 = scmp.ne.s32.totalorder %s419, %s420
      %p434 = scmp.eq.s32.totalorder %s42, 1
      %p435 = por %p433, %p434
      %p437 = scmp.ne.s32.totalorder %s420, %s436
      %p438 = scmp.eq.s32.totalorder %s42, 0
      %p439 = por %p437, %p438
      %s441 = sadd.s32 %s440, 1
      %p444 = scmp.eq.s32.totalorder %s36, 1
      %p445 = scmp.ne.s32.totalorder %s440, %s442
      %p446 = scmp.eq.s32.totalorder %s36, 0
      %p447 = por %p445, %p446
      %p448 = scmp.ne.s32.totalorder %s440, %s442
      %p449 = scmp.eq.s32.totalorder %s41, 1
      %p450 = por %p448, %p449
      %p451 = scmp.ne.s32.totalorder %s442, %s443
      %p452 = scmp.eq.s32.totalorder %s41, 0
      %p453 = por %p451, %p452
      %p454 = scmp.ne.s32.totalorder %s442, %s443
      %p455 = scmp.eq.s32.totalorder %s42, 1
      %p456 = por %p454, %p455
      %p458 = scmp.ne.s32.totalorder %s443, %s457
      %p459 = scmp.eq.s32.totalorder %s42, 0
      %p460 = por %p458, %p459
      %s462 = sadd.s32 %s461, 1
      %p465 = scmp.eq.s32.totalorder %s36, 1
      %p466 = scmp.ne.s32.totalorder %s461, %s463
      %p467 = scmp.eq.s32.totalorder %s36, 0
      %p468 = por %p466, %p467
      %p469 = scmp.ne.s32.totalorder %s461, %s463
      %p470 = scmp.eq.s32.totalorder %s41, 1
      %p471 = por %p469, %p470
      %p472 = scmp.ne.s32.totalorder %s463, %s464
      %p473 = scmp.eq.s32.totalorder %s41, 0
      %p474 = por %p472, %p473
      %p475 = scmp.ne.s32.totalorder %s463, %s464
      %p476 = scmp.eq.s32.totalorder %s42, 1
      %p477 = por %p475, %p476
      %p479 = scmp.ne.s32.totalorder %s464, %s478
      %p480 = scmp.eq.s32.totalorder %s42, 0
      %p481 = por %p479, %p480
      %s483 = sadd.s32 %s482, 1
      %p486 = scmp.eq.s32.totalorder %s36, 1
      %p487 = scmp.ne.s32.totalorder %s482, %s484
      %p488 = scmp.eq.s32.totalorder %s36, 0
      %p489 = por %p487, %p488
      %p490 = scmp.ne.s32.totalorder %s482, %s484
      %p491 = scmp.eq.s32.totalorder %s41, 1
      %p492 = por %p490, %p491
      %p493 = scmp.ne.s32.totalorder %s484, %s485
      %p494 = scmp.eq.s32.totalorder %s41, 0
      %p495 = por %p493, %p494
      %p496 = scmp.ne.s32.totalorder %s484, %s485
      %p497 = scmp.eq.s32.totalorder %s42, 1
      %p498 = por %p496, %p497
      %p500 = scmp.ne.s32.totalorder %s485, %s499
      %p501 = scmp.eq.s32.totalorder %s42, 0
      %p502 = por %p500, %p501
      %p503 = scmp.le.s32.totalorder 1, %s36
      %p504 = scmp.lt.s32.totalorder %s36, 3
      %p505 = pnand %p503, %p504
      %p506 = pneg %p505
      // Predicated region
      $region9: #{tpu_custom_call.1} parent=5 // pred_check
        _
      $region10: #{tpu_custom_call.1} parent=5 // pred_check_branch
        %508 = sbr.rel (%p505) target = $region12
      $region11: #{tpu_custom_call.1} parent=5 // pred_region
        %s509 = ssub.s32 %s36, 1
        // Predicated region
        $region13: #{tpu_custom_call.1} parent=11 // pred_check
          %p510 = pneg %p57
        $region14: #{tpu_custom_call.1} parent=11 // pred_check_branch
          %512 = sbr.rel (%p510) target = $region16
        $region15: #{tpu_custom_call.1} parent=11 // pred_region
          %514 = vsyncadd [#allocation4], 0
          %s515 = sshll.u32 %s0, 4
          %s516 = int_to_ptr.hbm [resolvable:$true] %s515
          %s517 = sshll.u32 [#allocation3], 4
          %s518 = int_to_ptr.vmem [resolvable:$true] %s517
          %523 = dma.hbm_to_vmem [thread:$0]  %s516, 256, %s518, [#allocation4], 128, 128, 8
        $region16: #{tpu_custom_call.1} parent=11 // pred_fallthru
          _
        // Predicated region
        $region17: #{tpu_custom_call.1} parent=11 // pred_check
          %p524 = pneg %p78
        $region18: #{tpu_custom_call.1} parent=11 // pred_check_branch
          %526 = sbr.rel (%p524) target = $region20
        $region19: #{tpu_custom_call.1} parent=11 // pred_region
          %528 = vsyncadd [#allocation7], 0
          %s529 = sshll.u32 %s1, 4
          %s530 = int_to_ptr.hbm [resolvable:$true] %s529
          %s531 = sshll.u32 [#allocation6], 4
          %s532 = int_to_ptr.vmem [resolvable:$true] %s531
          %537 = dma.hbm_to_vmem [thread:$0]  %s530, 256, %s532, [#allocation7], 128, 128, 8
        $region20: #{tpu_custom_call.1} parent=11 // pred_fallthru
          _
        // Predicated region
        $region21: #{tpu_custom_call.1} parent=11 // pred_check
          %p538 = pneg %p99
        $region22: #{tpu_custom_call.1} parent=11 // pred_check_branch
          %540 = sbr.rel (%p538) target = $region24
        $region23: #{tpu_custom_call.1} parent=11 // pred_region
          %542 = vsyncadd [#allocation7], 0
          %s543 = sshll.u32 %s2, 4
          %s544 = int_to_ptr.hbm [resolvable:$true] %s543
          %s545 = sshll.u32 [#allocation8], 4
          %s546 = int_to_ptr.vmem [resolvable:$true] %s545
          %551 = dma.hbm_to_vmem [thread:$0]  %s544, 128, %s546, [#allocation7], 64, 64, 4
        $region24: #{tpu_custom_call.1} parent=11 // pred_fallthru
          _
        // Predicated region
        $region25: #{tpu_custom_call.1} parent=11 // pred_check
          %p552 = pneg %p120
        $region26: #{tpu_custom_call.1} parent=11 // pred_check_branch
          %554 = sbr.rel (%p552) target = $region28
        $region27: #{tpu_custom_call.1} parent=11 // pred_region
          _
        $region28: #{tpu_custom_call.1} parent=11 // pred_fallthru
          _
        // Predicated region
        $region29: #{tpu_custom_call.1} parent=11 // pred_check
          %p555 = pneg %p453
        $region30: #{tpu_custom_call.1} parent=11 // pred_check_branch
          %557 = sbr.rel (%p555) target = $region32
        $region31: #{tpu_custom_call.1} parent=11 // pred_region
          _
        $region32: #{tpu_custom_call.1} parent=11 // pred_fallthru
          _
        // Predicated region
        $region33: #{tpu_custom_call.1} parent=11 // pred_check
          %p558 = pneg %p474
        $region34: #{tpu_custom_call.1} parent=11 // pred_check_branch
          %560 = sbr.rel (%p558) target = $region36
        $region35: #{tpu_custom_call.1} parent=11 // pred_region
          _
        $region36: #{tpu_custom_call.1} parent=11 // pred_fallthru
          _
      $region12: #{tpu_custom_call.1} parent=5 // pred_fallthru
        _
      %p561 = scmp.lt.s32.totalorder %s36, 2
      // Predicated region
      $region37: #{tpu_custom_call.1} parent=5 // pred_check
        %p562 = pneg %p561
      $region38: #{tpu_custom_call.1} parent=5 // pred_check_branch
        %564 = sbr.rel (%p562) target = $region40
      $region39: #{tpu_custom_call.1} parent=5 // pred_region
        // Predicated region
        $region41: #{tpu_custom_call.1} parent=39 // pred_check
          %p565 = pneg %p140
        $region42: #{tpu_custom_call.1} parent=39 // pred_check_branch
          %567 = sbr.rel (%p565) target = $region44
        $region43: #{tpu_custom_call.1} parent=39 // pred_region
          %p568 = scmp.lt.s32.totalorder %s36, 1
          %s569 = scalar_select %p568, %s36, 1
          %s570 = scalar_lea.vmem %s4, %s569
        $region44: #{tpu_custom_call.1} parent=39 // pred_fallthru
          _
        // Predicated region
        $region45: #{tpu_custom_call.1} parent=39 // pred_check
          %p571 = pneg %p166
        $region46: #{tpu_custom_call.1} parent=39 // pred_check_branch
          %573 = sbr.rel (%p571) target = $region48
        $region47: #{tpu_custom_call.1} parent=39 // pred_region
          %p574 = scmp.lt.s32.totalorder %s36, 1
          %s575 = scalar_select %p574, %s36, 1
          %s576 = scalar_lea.vmem %s5, %s575
        $region48: #{tpu_custom_call.1} parent=39 // pred_fallthru
          _
        // Predicated region
        $region49: #{tpu_custom_call.1} parent=39 // pred_check
          %p577 = pneg %p192
        $region50: #{tpu_custom_call.1} parent=39 // pred_check_branch
          %579 = sbr.rel (%p577) target = $region52
        $region51: #{tpu_custom_call.1} parent=39 // pred_region
          %p580 = scmp.lt.s32.totalorder %s36, 1
          %s581 = scalar_select %p580, %s36, 1
          %s582 = smul.addr %s581, 4
          %s583 = smul.addr %s582, 4
          %s584 = scalar_lea.vmem %s6, %s583
        $region52: #{tpu_custom_call.1} parent=39 // pred_fallthru
          _
        // Predicated region
        $region53: #{tpu_custom_call.1} parent=39 // pred_check
          %p585 = pneg %p218
        $region54: #{tpu_custom_call.1} parent=39 // pred_check_branch
          %587 = sbr.rel (%p585) target = $region56
        $region55: #{tpu_custom_call.1} parent=39 // pred_region
          %s588 = sand.u32 %s36, 1
          %s589 = scalar_lea.sflag [#allocation10], %s588
          %s590 = sand.u32 %s208, 1
          %s591 = scalar_lea.vmem [#allocation9], %s590
          %593 = vsyncadd %s589, 0
          %s594 = scalar_lea.hbm %s7, %s36
          %s596 = sshll.u32 %s594, 4
          %s597 = int_to_ptr.hbm [resolvable:$true] %s596
          %s598 = sshll.u32 %s591, 4
          %s599 = int_to_ptr.vmem [resolvable:$true] %s598
          %601 = dma.hbm_to_vmem [thread:$0]  %s597, 16, %s599, %s589
        $region56: #{tpu_custom_call.1} parent=39 // pred_fallthru
          _
        // Predicated region
        $region57: #{tpu_custom_call.1} parent=39 // pred_check
          %p602 = pneg %p244
        $region58: #{tpu_custom_call.1} parent=39 // pred_check_branch
          %604 = sbr.rel (%p602) target = $region60
        $region59: #{tpu_custom_call.1} parent=39 // pred_region
          %p605 = scmp.lt.s32.totalorder %s36, 1
          %s606 = scalar_select %p605, %s36, 1
          %s607 = smul.addr %s606, 4
          %s608 = smul.addr %s607, 4
          %s609 = scalar_lea.vmem %s8, %s608
        $region60: #{tpu_custom_call.1} parent=39 // pred_fallthru
          _
        // Predicated region
        $region61: #{tpu_custom_call.1} parent=39 // pred_check
          %p610 = pneg %p270
        $region62: #{tpu_custom_call.1} parent=39 // pred_check_branch
          %612 = sbr.rel (%p610) target = $region64
        $region63: #{tpu_custom_call.1} parent=39 // pred_region
          %s613 = sand.u32 %s36, 1
          %s614 = scalar_lea.sflag [#allocation10], %s613
          %s615 = sand.u32 %s260, 1
          %s616 = scalar_lea.vmem [#allocation11], %s615
          %618 = vsyncadd %s614, 0
          %s619 = scalar_lea.hbm %s9, %s36
          %s621 = sshll.u32 %s619, 4
          %s622 = int_to_ptr.hbm [resolvable:$true] %s621
          %s623 = sshll.u32 %s616, 4
          %s624 = int_to_ptr.vmem [resolvable:$true] %s623
          %626 = dma.hbm_to_vmem [thread:$0]  %s622, 16, %s624, %s614
        $region64: #{tpu_custom_call.1} parent=39 // pred_fallthru
          _
        // Predicated region
        $region65: #{tpu_custom_call.1} parent=39 // pred_check
          %p627 = pneg %p296
        $region66: #{tpu_custom_call.1} parent=39 // pred_check_branch
          %629 = sbr.rel (%p627) target = $region68
        $region67: #{tpu_custom_call.1} parent=39 // pred_region
          %s630 = sand.u32 %s36, 1
          %s631 = scalar_lea.sflag [#allocation13], %s630
          %s632 = sand.u32 %s286, 1
          %s633 = scalar_lea.vmem [#allocation12], %s632
          %635 = vsyncadd %s631, 0
          %s636 = scalar_lea.hbm %s10, %s36
          %s638 = sshll.u32 %s636, 4
          %s639 = int_to_ptr.hbm [resolvable:$true] %s638
          %s640 = sshll.u32 %s633, 4
          %s641 = int_to_ptr.vmem [resolvable:$true] %s640
          %643 = dma.hbm_to_vmem [thread:$0]  %s639, 16, %s641, %s631
        $region68: #{tpu_custom_call.1} parent=39 // pred_fallthru
          _
        // Predicated region
        $region69: #{tpu_custom_call.1} parent=39 // pred_check
          %p644 = pneg %p322
        $region70: #{tpu_custom_call.1} parent=39 // pred_check_branch
          %646 = sbr.rel (%p644) target = $region72
        $region71: #{tpu_custom_call.1} parent=39 // pred_region
          %s647 = sand.u32 %s36, 1
          %s648 = scalar_lea.sflag [#allocation13], %s647
          %s649 = sand.u32 %s312, 1
          %s650 = scalar_lea.vmem [#allocation14], %s649
          %652 = vsyncadd %s648, 0
          %s653 = scalar_lea.hbm %s11, %s36
          %s655 = sshll.u32 %s653, 4
          %s656 = int_to_ptr.hbm [resolvable:$true] %s655
          %s657 = sshll.u32 %s650, 4
          %s658 = int_to_ptr.vmem [resolvable:$true] %s657
          %660 = dma.hbm_to_vmem [thread:$0]  %s656, 16, %s658, %s648
        $region72: #{tpu_custom_call.1} parent=39 // pred_fallthru
          _
        // Predicated region
        $region73: #{tpu_custom_call.1} parent=39 // pred_check
          %p661 = pneg %p348
        $region74: #{tpu_custom_call.1} parent=39 // pred_check_branch
          %663 = sbr.rel (%p661) target = $region76
        $region75: #{tpu_custom_call.1} parent=39 // pred_region
          %p664 = scmp.lt.s32.totalorder %s36, 1
          %s665 = scalar_select %p664, %s36, 1
          %s666 = smul.addr %s665, 4
          %s667 = smul.addr %s666, 4
          %s668 = scalar_lea.vmem %s12, %s667
        $region76: #{tpu_custom_call.1} parent=39 // pred_fallthru
          _
        // Predicated region
        $region77: #{tpu_custom_call.1} parent=39 // pred_check
          %p669 = pneg %p374
        $region78: #{tpu_custom_call.1} parent=39 // pred_check_branch
          %671 = sbr.rel (%p669) target = $region80
        $region79: #{tpu_custom_call.1} parent=39 // pred_region
          %s672 = sand.u32 %s36, 1
          %s673 = scalar_lea.sflag [#allocation16], %s672
          %s674 = sand.u32 %s364, 1
          %s675 = scalar_lea.vmem [#allocation15], %s674
          %677 = vsyncadd %s673, 0
          %s678 = scalar_lea.hbm %s13, %s36
          %s680 = sshll.u32 %s678, 4
          %s681 = int_to_ptr.hbm [resolvable:$true] %s680
          %s682 = sshll.u32 %s675, 4
          %s683 = int_to_ptr.vmem [resolvable:$true] %s682
          %685 = dma.hbm_to_vmem [thread:$0]  %s681, 16, %s683, %s673
        $region80: #{tpu_custom_call.1} parent=39 // pred_fallthru
          _
        // Predicated region
        $region81: #{tpu_custom_call.1} parent=39 // pred_check
          %p686 = pneg %p400
        $region82: #{tpu_custom_call.1} parent=39 // pred_check_branch
          %688 = sbr.rel (%p686) target = $region84
        $region83: #{tpu_custom_call.1} parent=39 // pred_region
          %p689 = scmp.lt.s32.totalorder %s36, 1
          %s690 = scalar_select %p689, %s36, 1
          %s691 = smul.addr %s690, 8
          %s692 = smul.addr %s691, 4
          %s693 = scalar_lea.vmem %s14, %s692
        $region84: #{tpu_custom_call.1} parent=39 // pred_fallthru
          _
        // Predicated region
        $region85: #{tpu_custom_call.1} parent=39 // pred_check
          %p694 = pneg %p426
        $region86: #{tpu_custom_call.1} parent=39 // pred_check_branch
          %696 = sbr.rel (%p694) target = $region88
        $region87: #{tpu_custom_call.1} parent=39 // pred_region
          %s697 = sand.u32 %s36, 1
          %s698 = scalar_lea.sflag [#allocation16], %s697
          %s699 = sand.u32 %s416, 1
          %s700 = scalar_lea.vmem [#allocation17], %s699
          %702 = vsyncadd %s698, 0
          %s703 = scalar_lea.hbm %s15, %s36
          %s705 = sshll.u32 %s703, 4
          %s706 = int_to_ptr.hbm [resolvable:$true] %s705
          %s707 = sshll.u32 %s700, 4
          %s708 = int_to_ptr.vmem [resolvable:$true] %s707
          %710 = dma.hbm_to_vmem [thread:$0]  %s706, 16, %s708, %s698
        $region88: #{tpu_custom_call.1} parent=39 // pred_fallthru
          _
      $region40: #{tpu_custom_call.1} parent=5 // pred_fallthru
        _
      %p711 = scmp.le.s32.totalorder 1, %s36
      %p712 = scmp.lt.s32.totalorder %s36, 3
      %p713 = pnand %p711, %p712
      %p714 = pneg %p713
      // Predicated region
      $region89: #{tpu_custom_call.1} parent=5 // pred_check
        _
      $region90: #{tpu_custom_call.1} parent=5 // pred_check_branch
        %716 = sbr.rel (%p713) target = $region92
      $region91: #{tpu_custom_call.1} parent=5 // pred_region
        %s717 = ssub.s32 %s36, 1
        // Predicated region
        $region93: #{tpu_custom_call.1} parent=91 // pred_check
          %p718 = pneg %p57
        $region94: #{tpu_custom_call.1} parent=91 // pred_check_branch
          %720 = sbr.rel (%p718) target = $region96
        $region95: #{tpu_custom_call.1} parent=91 // pred_region
          %722 = dma.done [#allocation4], 256
        $region96: #{tpu_custom_call.1} parent=91 // pred_fallthru
          _
        // Predicated region
        $region97: #{tpu_custom_call.1} parent=91 // pred_check
          %p723 = pneg %p78
        $region98: #{tpu_custom_call.1} parent=91 // pred_check_branch
          %725 = sbr.rel (%p723) target = $region100
        $region99: #{tpu_custom_call.1} parent=91 // pred_region
          %727 = dma.done [#allocation7], 256
        $region100: #{tpu_custom_call.1} parent=91 // pred_fallthru
          _
        // Predicated region
        $region101: #{tpu_custom_call.1} parent=91 // pred_check
          %p728 = pneg %p99
        $region102: #{tpu_custom_call.1} parent=91 // pred_check_branch
          %730 = sbr.rel (%p728) target = $region104
        $region103: #{tpu_custom_call.1} parent=91 // pred_region
          %732 = dma.done [#allocation7], 128
        $region104: #{tpu_custom_call.1} parent=91 // pred_fallthru
          _
        %s733 = sand.u32 %s41, 1
        %s734 = scalar_lea.sflag [#allocation10], %s733
        %s735 = sand.u32 %s211, 1
        %s736 = scalar_lea.vmem [#allocation9], %s735
        // Predicated region
        $region105: #{tpu_custom_call.1} parent=91 // pred_check
          %p737 = pneg %p224
        $region106: #{tpu_custom_call.1} parent=91 // pred_check_branch
          %739 = sbr.rel (%p737) target = $region108
        $region107: #{tpu_custom_call.1} parent=91 // pred_region
          %741 = dma.done %s734, 16
        $region108: #{tpu_custom_call.1} parent=91 // pred_fallthru
          _
        %s742 = sand.u32 %s41, 1
        %s743 = scalar_lea.sflag [#allocation10], %s742
        %s744 = sand.u32 %s263, 1
        %s745 = scalar_lea.vmem [#allocation11], %s744
        // Predicated region
        $region109: #{tpu_custom_call.1} parent=91 // pred_check
          %p746 = pneg %p276
        $region110: #{tpu_custom_call.1} parent=91 // pred_check_branch
          %748 = sbr.rel (%p746) target = $region112
        $region111: #{tpu_custom_call.1} parent=91 // pred_region
          %750 = dma.done %s743, 16
        $region112: #{tpu_custom_call.1} parent=91 // pred_fallthru
          _
        %s751 = sand.u32 %s41, 1
        %s752 = scalar_lea.sflag [#allocation13], %s751
        %s753 = sand.u32 %s289, 1
        %s754 = scalar_lea.vmem [#allocation12], %s753
        // Predicated region
        $region113: #{tpu_custom_call.1} parent=91 // pred_check
          %p755 = pneg %p302
        $region114: #{tpu_custom_call.1} parent=91 // pred_check_branch
          %757 = sbr.rel (%p755) target = $region116
        $region115: #{tpu_custom_call.1} parent=91 // pred_region
          %759 = dma.done %s752, 16
        $region116: #{tpu_custom_call.1} parent=91 // pred_fallthru
          _
        %s760 = sand.u32 %s41, 1
        %s761 = scalar_lea.sflag [#allocation13], %s760
        %s762 = sand.u32 %s315, 1
        %s763 = scalar_lea.vmem [#allocation14], %s762
        // Predicated region
        $region117: #{tpu_custom_call.1} parent=91 // pred_check
          %p764 = pneg %p328
        $region118: #{tpu_custom_call.1} parent=91 // pred_check_branch
          %766 = sbr.rel (%p764) target = $region120
        $region119: #{tpu_custom_call.1} parent=91 // pred_region
          %768 = dma.done %s761, 16
        $region120: #{tpu_custom_call.1} parent=91 // pred_fallthru
          _
        %s769 = sand.u32 %s41, 1
        %s770 = scalar_lea.sflag [#allocation16], %s769
        %s771 = sand.u32 %s367, 1
        %s772 = scalar_lea.vmem [#allocation15], %s771
        // Predicated region
        $region121: #{tpu_custom_call.1} parent=91 // pred_check
          %p773 = pneg %p380
        $region122: #{tpu_custom_call.1} parent=91 // pred_check_branch
          %775 = sbr.rel (%p773) target = $region124
        $region123: #{tpu_custom_call.1} parent=91 // pred_region
          %777 = dma.done %s770, 16
        $region124: #{tpu_custom_call.1} parent=91 // pred_fallthru
          _
        %s778 = sand.u32 %s41, 1
        %s779 = scalar_lea.sflag [#allocation16], %s778
        %s780 = sand.u32 %s419, 1
        %s781 = scalar_lea.vmem [#allocation17], %s780
        // Predicated region
        $region125: #{tpu_custom_call.1} parent=91 // pred_check
          %p782 = pneg %p432
        $region126: #{tpu_custom_call.1} parent=91 // pred_check_branch
          %784 = sbr.rel (%p782) target = $region128
        $region127: #{tpu_custom_call.1} parent=91 // pred_region
          %786 = dma.done %s779, 16
        $region128: #{tpu_custom_call.1} parent=91 // pred_fallthru
          _
        %p787 = pneg %p57
        %p788 = pneg %p54
        %p789 = pneg %p78
        %p790 = pneg %p75
        %p791 = pneg %p99
        %p792 = pneg %p96
        %p793 = pneg %p120
        %p794 = pneg %p117
        %p795 = scmp.lt.s32.totalorder %s41, 1
        %s796 = scalar_select %p795, %s41, 1
        %s797 = scalar_lea.vmem %s4, %s796
        %p798 = pneg %p146
        %p799 = pneg %p143
        %p800 = scmp.lt.s32.totalorder %s41, 1
        %s801 = scalar_select %p800, %s41, 1
        %s802 = scalar_lea.vmem %s5, %s801
        %p803 = pneg %p172
        %p804 = pneg %p169
        %p805 = scmp.lt.s32.totalorder %s41, 1
        %s806 = scalar_select %p805, %s41, 1
        %s807 = smul.addr %s806, 4
        %s808 = smul.addr %s807, 4
        %s809 = scalar_lea.vmem %s6, %s808
        %p810 = pneg %p198
        %p811 = pneg %p195
        %s812 = sand.u32 %s41, 1
        %s813 = scalar_lea.sflag [#allocation10], %s812
        %s814 = sand.u32 %s211, 1
        %s815 = scalar_lea.vmem [#allocation9], %s814
        %p816 = pneg %p224
        %p817 = pneg %p221
        %p818 = scmp.lt.s32.totalorder %s41, 1
        %s819 = scalar_select %p818, %s41, 1
        %s820 = smul.addr %s819, 4
        %s821 = smul.addr %s820, 4
        %s822 = scalar_lea.vmem %s8, %s821
        %p823 = pneg %p250
        %p824 = pneg %p247
        %s825 = sand.u32 %s41, 1
        %s826 = scalar_lea.sflag [#allocation10], %s825
        %s827 = sand.u32 %s263, 1
        %s828 = scalar_lea.vmem [#allocation11], %s827
        %p829 = pneg %p276
        %p830 = pneg %p273
        %s831 = sand.u32 %s41, 1
        %s832 = scalar_lea.sflag [#allocation13], %s831
        %s833 = sand.u32 %s289, 1
        %s834 = scalar_lea.vmem [#allocation12], %s833
        %p835 = pneg %p302
        %p836 = pneg %p299
        %s837 = sand.u32 %s41, 1
        %s838 = scalar_lea.sflag [#allocation13], %s837
        %s839 = sand.u32 %s315, 1
        %s840 = scalar_lea.vmem [#allocation14], %s839
        %p841 = pneg %p328
        %p842 = pneg %p325
        %p843 = scmp.lt.s32.totalorder %s41, 1
        %s844 = scalar_select %p843, %s41, 1
        %s845 = smul.addr %s844, 4
        %s846 = smul.addr %s845, 4
        %s847 = scalar_lea.vmem %s12, %s846
        %p848 = pneg %p354
        %p849 = pneg %p351
        %s850 = sand.u32 %s41, 1
        %s851 = scalar_lea.sflag [#allocation16], %s850
        %s852 = sand.u32 %s367, 1
        %s853 = scalar_lea.vmem [#allocation15], %s852
        %p854 = pneg %p380
        %p855 = pneg %p377
        %p856 = scmp.lt.s32.totalorder %s41, 1
        %s857 = scalar_select %p856, %s41, 1
        %s858 = smul.addr %s857, 8
        %s859 = smul.addr %s858, 4
        %s860 = scalar_lea.vmem %s14, %s859
        %p861 = pneg %p406
        %p862 = pneg %p403
        %s863 = sand.u32 %s41, 1
        %s864 = scalar_lea.sflag [#allocation16], %s863
        %s865 = sand.u32 %s419, 1
        %s866 = scalar_lea.vmem [#allocation17], %s865
        %p867 = pneg %p432
        %p868 = pneg %p429
        %p869 = pneg %p453
        %p870 = pneg %p450
        %p871 = pneg %p474
        %p872 = pneg %p471
        %p873 = pneg %p495
        %p874 = pneg %p492
        %p875 = scmp.lt.s32.totalorder %s41, 1
        %s876 = scalar_select %p875, %s41, 1
        %s877 = scalar_lea.vmem %s4, %s876
        %p878 = scmp.lt.s32.totalorder %s41, 1
        %s879 = scalar_select %p878, %s41, 1
        %s880 = scalar_lea.vmem %s5, %s879
        %p881 = scmp.lt.s32.totalorder %s41, 1
        %s882 = scalar_select %p881, %s41, 1
        %s883 = smul.addr %s882, 4
        %s884 = smul.addr %s883, 4
        %s885 = scalar_lea.vmem %s6, %s884
        %p886 = scmp.lt.s32.totalorder %s41, 1
        %s887 = scalar_select %p886, %s41, 1
        %s888 = smul.addr %s887, 4
        %s889 = smul.addr %s888, 4
        %s890 = scalar_lea.vmem %s8, %s889
        %p891 = scmp.lt.s32.totalorder %s41, 1
        %s892 = scalar_select %p891, %s41, 1
        %s893 = smul.addr %s892, 4
        %s894 = smul.addr %s893, 4
        %s895 = scalar_lea.vmem %s12, %s894
        %p896 = scmp.lt.s32.totalorder %s41, 1
        %s897 = scalar_select %p896, %s41, 1
        %s898 = smul.addr %s897, 8
        %s899 = smul.addr %s898, 4
        %s900 = scalar_lea.vmem %s14, %s899
        %p902 = scmp.eq.s32.totalorder %s41, 0
        // Predicated region
        $region129: #{tpu_custom_call.1} parent=91 // pred_check
          %p903 = pneg %p902
        $region130: #{tpu_custom_call.1} parent=91 // pred_check_branch
          %905 = sbr.rel (%p903) target = $region132
        $region131: #{tpu_custom_call.1} parent=91 // pred_region
          %v906 = vld [vmem:[#allocation3] sm:$0xff]
          %v907 = vld [vmem:[#allocation3 + $0x8] sm:$0xff]
          %v908 = vpack.c.bf16 %v907, %v906
          %v909 = vld [vmem:[#allocation8] sm:$0xf]
          %v910 = vld [vmem:[#allocation8 + $0x4] sm:$0xf]
          %v911 = vld [vmem:[%s3] sm:$0x1]
          %v913 = vperm.slane %v911, 0
          %v917 = vunpack.c.l.b16 %v909
          %v918 = vunpack.c.l.b16 %v910
          %v919 = vpack.c.b16 %v918, %v917
          %vm921 = vcmask 130048
          %v923 = vsel %vm921, %v908, 0
          %925 = vmatpush.bf16.msra.mxu0 0
          %926 = vmatpush.bf16.msra.mxu0 0
          %927 = vmatpush.bf16.msra.mxu0 0
          %928 = vmatpush.bf16.msra.mxu0 0
          %929 = vmatpush.bf16.msra.mxu0 0
          %930 = vmatpush.bf16.msra.mxu0 0
          %931 = vmatpush.bf16.msra.mxu0 0
          %932 = vmatpush.bf16.msra.mxu0 %v919
          %933 = vmatmul.bf16.gmra.mxu0 %v923
          %v934 = vpop.f32.mrf.mxu0
          %v935 = vadd.f32 %v913, %v934
          %v936 = vpop.f32.mrf.mxu0
          %v937 = vadd.f32 %v913, %v936
          %938 = vdwg.mxu0
          %v939 = vld [vmem:[#allocation6] sm:$0xff]
          %v940 = vld [vmem:[#allocation6 + $0x8] sm:$0xff]
          %v941 = vadd.f32 %v935, %v939
          %v942 = vadd.f32 %v937, %v940
          %vm943 = vcmask 261120
          %944 = vst.msk [vmem:[#allocation2] sm:$0xff] %vm943, %v941
          %945 = vst.msk [vmem:[#allocation2 + $0x8] sm:$0xff] %vm943, %v942
        $region132: #{tpu_custom_call.1} parent=91 // pred_fallthru
          _
        %v946 = vld [vmem:[#allocation2] sm:$0xff]
        %v947 = vld [vmem:[#allocation2 + $0x8] sm:$0xff]
        %v948 = vld [vmem:[%s877] sm:$0x1]
        %v949 = vld [vmem:[%s880] sm:$0x1]
        %vm950 = vcmask 261120
        %v951 = vsel %vm950, %v946, 0.0
        %952 = vadd.xlane.f32.xlu0 %v951
        %v953 = vpop.xlane.xlu0 %952
        %v954 = vsel %vm950, %v947, 0.0
        %955 = vadd.xlane.f32.xlu0 %v954
        %v956 = vpop.xlane.xlu0 %955
        %v957 = vrcp.pop 32.0
        %v958 = vmul.f32 32.0, %v957
        %v959 = vsub.f32 1.0, %v958
        %v960 = vmul.f32 %v957, %v959
        %v961 = vadd.f32 %v957, %v960
        %vm962 = vweird.f32 %v957
        %v963 = vsel %vm962, %v957, %v961
        %v964 = vmul.f32 %v953, %v963
        %v965 = vmul.f32 %v956, %v963
        %v966 = vsub.f32 %v946, %v964
        %v967 = vsub.f32 %v947, %v965
        %v968 = vmul.f32 %v966, %v966
        %v969 = vmul.f32 %v967, %v967
        %v970 = vsel %vm950, %v968, 0.0
        %971 = vadd.xlane.f32.xlu0 %v970
        %v972 = vpop.xlane.xlu0 %971
        %v973 = vsel %vm950, %v969, 0.0
        %974 = vadd.xlane.f32.xlu0 %v973
        %v975 = vpop.xlane.xlu0 %974
        %v976 = vmul.f32 %v972, %v963
        %v977 = vmul.f32 %v975, %v963
        %v978 = vadd.f32 %v976, 1e-05
        %v979 = vadd.f32 %v977, 1e-05
        %v980 = vrsqrt.pop %v978
        %v981 = vmul.f32 %v980, %v978
        %v982 = vmul.f32 %v981, %v980
        %v983 = vmul.f32 0.5, %v982
        %v984 = vsub.f32 1.5, %v983
        %v985 = vmul.f32 %v980, %v984
        %vm986 = vweird.f32 %v978
        %vm987 = vweird.f32 %v980
        %vm988 = vmor %vm986, %vm987
        %v989 = vsel %vm988, %v980, %v985
        %v990 = vrsqrt.pop %v979
        %v991 = vmul.f32 %v990, %v979
        %v992 = vmul.f32 %v991, %v990
        %v993 = vmul.f32 0.5, %v992
        %v994 = vsub.f32 1.5, %v993
        %v995 = vmul.f32 %v990, %v994
        %vm996 = vweird.f32 %v979
        %vm997 = vweird.f32 %v990
        %vm998 = vmor %vm996, %vm997
        %v999 = vsel %vm998, %v990, %v995
        %v1000 = vmul.f32 %v966, %v989
        %v1001 = vmul.f32 %v967, %v999
        %v1003 = vperm.slane %v948, 0
        %v1005 = vmul.f32 %v1000, %v1003
        %v1006 = vmul.f32 %v1001, %v1003
        %v1008 = vperm.slane %v949, 0
        %v1010 = vadd.f32 %v1005, %v1008
        %v1011 = vadd.f32 %v1006, %v1008
        %v1012 = vpack.c.bf16 %v1011, %v1010
        %v1013 = vld [vmem:[%s885] sm:$0xf]
        %v1014 = vld [vmem:[%s885 + $0x4] sm:$0xf]
        %v1015 = vld [vmem:[%s885 + $0x8] sm:$0xf]
        %v1016 = vld [vmem:[%s885 + $0xc] sm:$0xf]
        %v1017 = vld [vmem:[%s736] sm:$0x1]
        %v1019 = vperm.slane %v1017, 0
        %v1025 = vunpack.c.l.b16 %v1013
        %v1026 = vunpack.c.l.b16 %v1014
        %v1027 = vunpack.c.l.b16 %v1015
        %v1028 = vunpack.c.l.b16 %v1016
        %v1029 = vpack.c.b16 %v1026, %v1025
        %v1030 = vpack.c.b16 %v1028, %v1027
        %v1034 = vsel %vm950, %v1012, 0
        %1036 = vmatpush.bf16.msra.mxu0 0
        %1037 = vmatpush.bf16.msra.mxu0 0
        %1038 = vmatpush.bf16.msra.mxu0 0
        %1039 = vmatpush.bf16.msra.mxu0 0
        %1040 = vmatpush.bf16.msra.mxu0 0
        %1041 = vmatpush.bf16.msra.mxu0 0
        %1042 = vmatpush.bf16.msra.mxu0 %v1030
        %1043 = vmatpush.bf16.msra.mxu0 %v1029
        %1044 = vmatmul.bf16.gmra.mxu0 %v1034
        %v1045 = vpop.f32.mrf.mxu0
        %v1046 = vadd.f32 %v1019, %v1045
        %v1047 = vpop.f32.mrf.mxu0
        %v1048 = vadd.f32 %v1019, %v1047
        %1049 = vdwg.mxu0
        %v1050 = vpack.c.bf16 %v1046, %v1046
        %v1051 = vpack.c.bf16 %v1048, %v1048
        %v1053 = vunpack.c.l.b16 %v1050
        %v1054 = vpack.c.b16 %v1053, %v1053
        %1055 = vrot.lane.b32.xlu0 %v1054, 96
        %v1056 = vpop.permute.xlu0 %1055
        %vm1057 = vcmask 64512
        %v1059 = vsel %vm1057, %v1050, 0
        %v1062 = vsel %vm1057, %v1056, 0
        %1064 = vmatpush.bf16.xpose.msra.mxu0 0
        %1065 = vmatpush.bf16.xpose.msra.mxu0 0
        %1066 = vmatpush.bf16.xpose.msra.mxu0 0
        %1067 = vmatpush.bf16.xpose.msra.mxu0 0
        %1068 = vmatpush.bf16.xpose.msra.mxu0 0
        %1069 = vmatpush.bf16.xpose.msra.mxu0 0
        %1070 = vmatpush.bf16.xpose.msra.mxu0 0
        %1071 = vmatpush.bf16.xpose.msra.mxu0 %v1062
        %1072 = vmatmul.bf16.gmra.mxu0 %v1059
        %v1073 = vpop.f32.mrf.mxu0
        %v1074 = vadd.f32 0.0, %v1073
        %v1075 = vpop.f32.mrf.mxu0
        %1076 = vdwg.mxu0
        %v1078 = vunpack.c.l.b16 %v1051
        %v1079 = vpack.c.b16 %v1078, %v1078
        %1080 = vrot.lane.b32.xlu0 %v1079, 96
        %v1081 = vpop.permute.xlu0 %1080
        %v1083 = vsel %vm1057, %v1051, 0
        %v1086 = vsel %vm1057, %v1081, 0
        %1088 = vmatpush.bf16.xpose.msra.mxu0 0
        %1089 = vmatpush.bf16.xpose.msra.mxu0 0
        %1090 = vmatpush.bf16.xpose.msra.mxu0 0
        %1091 = vmatpush.bf16.xpose.msra.mxu0 0
        %1092 = vmatpush.bf16.xpose.msra.mxu0 0
        %1093 = vmatpush.bf16.xpose.msra.mxu0 0
        %1094 = vmatpush.bf16.xpose.msra.mxu0 0
        %1095 = vmatpush.bf16.xpose.msra.mxu0 %v1086
        %1096 = vmatmul.bf16.gmra.mxu0 %v1083
        %v1097 = vpop.f32.mrf.mxu0
        %v1098 = vadd.f32 0.0, %v1097
        %v1099 = vpop.f32.mrf.mxu0
        %1100 = vdwg.mxu0
        %v1101 = vmul.f32 %v1074, 0.35355338
        %v1102 = vmul.f32 %v1098, 0.35355338
        %v1103 = vsel %vm1057, %v1101, -inf
        %1104 = vmax.xlane.f32.xlu0 %v1103
        %v1105 = vpop.xlane.xlu0 %1104
        %v1106 = vsel %vm1057, %v1102, -inf
        %1107 = vmax.xlane.f32.xlu0 %v1106
        %v1108 = vpop.xlane.xlu0 %1107
        %v1109 = vsub.f32 %v1101, %v1105
        %v1110 = vsub.f32 %v1102, %v1108
        %v1111 = vmul.f32 %v1109, 1.442695
        %v1112 = vpow.pop %v1111
        %v1113 = vmul.f32 %v1110, 1.442695
        %v1114 = vpow.pop %v1113
        %v1115 = vsel %vm1057, %v1112, 0.0
        %1116 = vadd.xlane.f32.xlu0 %v1115
        %v1117 = vpop.xlane.xlu0 %1116
        %v1118 = vsel %vm1057, %v1114, 0.0
        %1119 = vadd.xlane.f32.xlu0 %v1118
        %v1120 = vpop.xlane.xlu0 %1119
        %v1121 = vrcp.pop %v1117
        %v1122 = vrcp.pop %v1120
        %v1123 = vmul.f32 %v1112, %v1121
        %v1124 = vmul.f32 %v1114, %v1122
        %v1125 = vpack.c.bf16 %v1123, %v1123
        %v1126 = vpack.c.bf16 %v1124, %v1124
        %1127 = vrot.lane.b32.xlu0 %v1054, 64
        %v1128 = vpop.permute.xlu0 %1127
        %v1130 = vsel %vm1057, %v1125, 0
        %vm1132 = vcmask 1043456
        %v1134 = vsel %vm1132, %v1128, 0
        %1136 = vmatpush.bf16.msra.mxu0 0
        %1137 = vmatpush.bf16.msra.mxu0 0
        %1138 = vmatpush.bf16.msra.mxu0 0
        %1139 = vmatpush.bf16.msra.mxu0 0
        %1140 = vmatpush.bf16.msra.mxu0 0
        %1141 = vmatpush.bf16.msra.mxu0 0
        %1142 = vmatpush.bf16.msra.mxu0 0
        %1143 = vmatpush.bf16.msra.mxu0 %v1134
        %1144 = vmatmul.bf16.gmra.mxu0 %v1130
        %v1145 = vpop.f32.mrf.mxu0
        %v1146 = vadd.f32 0.0, %v1145
        %v1147 = vpop.f32.mrf.mxu0
        %1148 = vdwg.mxu0
        %1149 = vrot.lane.b32.xlu0 %v1079, 64
        %v1150 = vpop.permute.xlu0 %1149
        %v1152 = vsel %vm1057, %v1126, 0
        %v1155 = vsel %vm1132, %v1150, 0
        %1157 = vmatpush.bf16.msra.mxu0 0
        %1158 = vmatpush.bf16.msra.mxu0 0
        %1159 = vmatpush.bf16.msra.mxu0 0
        %1160 = vmatpush.bf16.msra.mxu0 0
        %1161 = vmatpush.bf16.msra.mxu0 0
        %1162 = vmatpush.bf16.msra.mxu0 0
        %1163 = vmatpush.bf16.msra.mxu0 0
        %1164 = vmatpush.bf16.msra.mxu0 %v1155
        %1165 = vmatmul.bf16.gmra.mxu0 %v1152
        %v1166 = vpop.f32.mrf.mxu0
        %v1167 = vadd.f32 0.0, %v1166
        %v1168 = vpop.f32.mrf.mxu0
        %1169 = vdwg.mxu0
        %v1170 = vpack.c.bf16 %v1167, %v1146
        %v1171 = vld [vmem:[%s890] sm:$0xf]
        %1172 = vrot.lane.b32.xlu0 %v1054, 120
        %v1173 = vpop.permute.xlu0 %1172
        %1174 = vrot.lane.b32.xlu0 %v1054, 88
        %v1175 = vpop.permute.xlu0 %1174
        %v1177 = vsel %vm1057, %v1173, 0
        %v1180 = vsel %vm1057, %v1175, 0
        %1182 = vmatpush.bf16.xpose.msra.mxu0 0
        %1183 = vmatpush.bf16.xpose.msra.mxu0 0
        %1184 = vmatpush.bf16.xpose.msra.mxu0 0
        %1185 = vmatpush.bf16.xpose.msra.mxu0 0
        %1186 = vmatpush.bf16.xpose.msra.mxu0 0
        %1187 = vmatpush.bf16.xpose.msra.mxu0 0
        %1188 = vmatpush.bf16.xpose.msra.mxu0 0
        %1189 = vmatpush.bf16.xpose.msra.mxu0 %v1180
        %1190 = vmatmul.bf16.gmra.mxu0 %v1177
        %v1191 = vpop.f32.mrf.mxu0
        %v1192 = vadd.f32 0.0, %v1191
        %v1193 = vpop.f32.mrf.mxu0
        %1194 = vdwg.mxu0
        %1195 = vrot.lane.b32.xlu0 %v1079, 120
        %v1196 = vpop.permute.xlu0 %1195
        %1197 = vrot.lane.b32.xlu0 %v1079, 88
        %v1198 = vpop.permute.xlu0 %1197
        %v1200 = vsel %vm1057, %v1196, 0
        %v1203 = vsel %vm1057, %v1198, 0
        %1205 = vmatpush.bf16.xpose.msra.mxu0 0
        %1206 = vmatpush.bf16.xpose.msra.mxu0 0
        %1207 = vmatpush.bf16.xpose.msra.mxu0 0
        %1208 = vmatpush.bf16.xpose.msra.mxu0 0
        %1209 = vmatpush.bf16.xpose.msra.mxu0 0
        %1210 = vmatpush.bf16.xpose.msra.mxu0 0
        %1211 = vmatpush.bf16.xpose.msra.mxu0 0
        %1212 = vmatpush.bf16.xpose.msra.mxu0 %v1203
        %1213 = vmatmul.bf16.gmra.mxu0 %v1200
        %v1214 = vpop.f32.mrf.mxu0
        %v1215 = vadd.f32 0.0, %v1214
        %v1216 = vpop.f32.mrf.mxu0
        %1217 = vdwg.mxu0
        %v1218 = vmul.f32 %v1192, 0.35355338
        %v1219 = vmul.f32 %v1215, 0.35355338
        %v1220 = vsel %vm1057, %v1218, -inf
        %1221 = vmax.xlane.f32.xlu0 %v1220
        %v1222 = vpop.xlane.xlu0 %1221
        %v1223 = vsel %vm1057, %v1219, -inf
        %1224 = vmax.xlane.f32.xlu0 %v1223
        %v1225 = vpop.xlane.xlu0 %1224
        %v1226 = vsub.f32 %v1218, %v1222
        %v1227 = vsub.f32 %v1219, %v1225
        %v1228 = vmul.f32 %v1226, 1.442695
        %v1229 = vpow.pop %v1228
        %v1230 = vmul.f32 %v1227, 1.442695
        %v1231 = vpow.pop %v1230
        %v1232 = vsel %vm1057, %v1229, 0.0
        %1233 = vadd.xlane.f32.xlu0 %v1232
        %v1234 = vpop.xlane.xlu0 %1233
        %v1235 = vsel %vm1057, %v1231, 0.0
        %1236 = vadd.xlane.f32.xlu0 %v1235
        %v1237 = vpop.xlane.xlu0 %1236
        %v1238 = vrcp.pop %v1234
        %v1239 = vrcp.pop %v1237
        %v1240 = vmul.f32 %v1229, %v1238
        %v1241 = vmul.f32 %v1231, %v1239
        %v1242 = vpack.c.bf16 %v1240, %v1240
        %v1243 = vpack.c.bf16 %v1241, %v1241
        %1244 = vrot.lane.b32.xlu0 %v1054, 56
        %v1245 = vpop.permute.xlu0 %1244
        %v1247 = vsel %vm1057, %v1242, 0
        %v1250 = vsel %vm1132, %v1245, 0
        %1252 = vmatpush.bf16.msra.mxu0 0
        %1253 = vmatpush.bf16.msra.mxu0 0
        %1254 = vmatpush.bf16.msra.mxu0 0
        %1255 = vmatpush.bf16.msra.mxu0 0
        %1256 = vmatpush.bf16.msra.mxu0 0
        %1257 = vmatpush.bf16.msra.mxu0 0
        %1258 = vmatpush.bf16.msra.mxu0 0
        %1259 = vmatpush.bf16.msra.mxu0 %v1250
        %1260 = vmatmul.bf16.gmra.mxu0 %v1247
        %v1261 = vpop.f32.mrf.mxu0
        %v1262 = vadd.f32 0.0, %v1261
        %v1263 = vpop.f32.mrf.mxu0
        %1264 = vdwg.mxu0
        %1265 = vrot.lane.b32.xlu0 %v1079, 56
        %v1266 = vpop.permute.xlu0 %1265
        %v1268 = vsel %vm1057, %v1243, 0
        %v1271 = vsel %vm1132, %v1266, 0
        %1273 = vmatpush.bf16.msra.mxu0 0
        %1274 = vmatpush.bf16.msra.mxu0 0
        %1275 = vmatpush.bf16.msra.mxu0 0
        %1276 = vmatpush.bf16.msra.mxu0 0
        %1277 = vmatpush.bf16.msra.mxu0 0
        %1278 = vmatpush.bf16.msra.mxu0 0
        %1279 = vmatpush.bf16.msra.mxu0 0
        %1280 = vmatpush.bf16.msra.mxu0 %v1271
        %1281 = vmatmul.bf16.gmra.mxu0 %v1268
        %v1282 = vpop.f32.mrf.mxu0
        %v1283 = vadd.f32 0.0, %v1282
        %v1284 = vpop.f32.mrf.mxu0
        %1285 = vdwg.mxu0
        %v1286 = vpack.c.bf16 %v1283, %v1262
        %s1287 = scalar_lea.vmem %s890, 4
        %v1288 = vld [vmem:[%s1287] sm:$0xf]
        %v1290 = vsel %vm1057, %v1286, 0
        %v1293 = vsel %vm1132, %v1288, 0
        %1295 = vmatpush.bf16.msra.mxu0 0
        %1296 = vmatpush.bf16.msra.mxu0 0
        %1297 = vmatpush.bf16.msra.mxu0 0
        %1298 = vmatpush.bf16.msra.mxu0 0
        %1299 = vmatpush.bf16.msra.mxu0 0
        %1300 = vmatpush.bf16.msra.mxu0 0
        %1301 = vmatpush.bf16.msra.mxu0 0
        %1302 = vmatpush.bf16.msra.mxu0 %v1293
        %1303 = vmatmul.bf16.gmra.mxu0 %v1290
        %v1304 = vpop.f32.mrf.mxu0
        %v1305 = vadd.f32 0.0, %v1304
        %v1306 = vpop.f32.mrf.mxu0
        %v1307 = vadd.f32 0.0, %v1306
        %1308 = vdwg.mxu0
        %v1310 = vsel %vm1057, %v1170, 0
        %v1313 = vsel %vm1132, %v1171, 0
        %1315 = vmatpush.bf16.msra.mxu0 0
        %1316 = vmatpush.bf16.msra.mxu0 0
        %1317 = vmatpush.bf16.msra.mxu0 0
        %1318 = vmatpush.bf16.msra.mxu0 0
        %1319 = vmatpush.bf16.msra.mxu0 0
        %1320 = vmatpush.bf16.msra.mxu0 0
        %1321 = vmatpush.bf16.msra.mxu0 0
        %1322 = vmatpush.bf16.msra.mxu0 %v1313
        %1323 = vmatmul.bf16.gmra.mxu0 %v1310
        %v1324 = vpop.f32.mrf.mxu0
        %v1325 = vadd.f32 %v1305, %v1324
        %v1326 = vpop.f32.mrf.mxu0
        %v1327 = vadd.f32 %v1307, %v1326
        %1328 = vdwg.mxu0
        %1329 = vrot.lane.b32.xlu0 %v1054, 112
        %v1330 = vpop.permute.xlu0 %1329
        %1331 = vrot.lane.b32.xlu0 %v1054, 80
        %v1332 = vpop.permute.xlu0 %1331
        %v1334 = vsel %vm1057, %v1330, 0
        %v1337 = vsel %vm1057, %v1332, 0
        %1339 = vmatpush.bf16.xpose.msra.mxu0 0
        %1340 = vmatpush.bf16.xpose.msra.mxu0 0
        %1341 = vmatpush.bf16.xpose.msra.mxu0 0
        %1342 = vmatpush.bf16.xpose.msra.mxu0 0
        %1343 = vmatpush.bf16.xpose.msra.mxu0 0
        %1344 = vmatpush.bf16.xpose.msra.mxu0 0
        %1345 = vmatpush.bf16.xpose.msra.mxu0 0
        %1346 = vmatpush.bf16.xpose.msra.mxu0 %v1337
        %1347 = vmatmul.bf16.gmra.mxu0 %v1334
        %v1348 = vpop.f32.mrf.mxu0
        %v1349 = vadd.f32 0.0, %v1348
        %v1350 = vpop.f32.mrf.mxu0
        %1351 = vdwg.mxu0
        %1352 = vrot.lane.b32.xlu0 %v1079, 112
        %v1353 = vpop.permute.xlu0 %1352
        %1354 = vrot.lane.b32.xlu0 %v1079, 80
        %v1355 = vpop.permute.xlu0 %1354
        %v1357 = vsel %vm1057, %v1353, 0
        %v1360 = vsel %vm1057, %v1355, 0
        %1362 = vmatpush.bf16.xpose.msra.mxu0 0
        %1363 = vmatpush.bf16.xpose.msra.mxu0 0
        %1364 = vmatpush.bf16.xpose.msra.mxu0 0
        %1365 = vmatpush.bf16.xpose.msra.mxu0 0
        %1366 = vmatpush.bf16.xpose.msra.mxu0 0
        %1367 = vmatpush.bf16.xpose.msra.mxu0 0
        %1368 = vmatpush.bf16.xpose.msra.mxu0 0
        %1369 = vmatpush.bf16.xpose.msra.mxu0 %v1360
        %1370 = vmatmul.bf16.gmra.mxu0 %v1357
        %v1371 = vpop.f32.mrf.mxu0
        %v1372 = vadd.f32 0.0, %v1371
        %v1373 = vpop.f32.mrf.mxu0
        %1374 = vdwg.mxu0
        %v1375 = vmul.f32 %v1349, 0.35355338
        %v1376 = vmul.f32 %v1372, 0.35355338
        %v1377 = vsel %vm1057, %v1375, -inf
        %1378 = vmax.xlane.f32.xlu0 %v1377
        %v1379 = vpop.xlane.xlu0 %1378
        %v1380 = vsel %vm1057, %v1376, -inf
        %1381 = vmax.xlane.f32.xlu0 %v1380
        %v1382 = vpop.xlane.xlu0 %1381
        %v1383 = vsub.f32 %v1375, %v1379
        %v1384 = vsub.f32 %v1376, %v1382
        %v1385 = vmul.f32 %v1383, 1.442695
        %v1386 = vpow.pop %v1385
        %v1387 = vmul.f32 %v1384, 1.442695
        %v1388 = vpow.pop %v1387
        %v1389 = vsel %vm1057, %v1386, 0.0
        %1390 = vadd.xlane.f32.xlu0 %v1389
        %v1391 = vpop.xlane.xlu0 %1390
        %v1392 = vsel %vm1057, %v1388, 0.0
        %1393 = vadd.xlane.f32.xlu0 %v1392
        %v1394 = vpop.xlane.xlu0 %1393
        %v1395 = vrcp.pop %v1391
        %v1396 = vrcp.pop %v1394
        %v1397 = vmul.f32 %v1386, %v1395
        %v1398 = vmul.f32 %v1388, %v1396
        %v1399 = vpack.c.bf16 %v1397, %v1397
        %v1400 = vpack.c.bf16 %v1398, %v1398
        %1401 = vrot.lane.b32.xlu0 %v1054, 48
        %v1402 = vpop.permute.xlu0 %1401
        %v1404 = vsel %vm1057, %v1399, 0
        %v1407 = vsel %vm1132, %v1402, 0
        %1409 = vmatpush.bf16.msra.mxu0 0
        %1410 = vmatpush.bf16.msra.mxu0 0
        %1411 = vmatpush.bf16.msra.mxu0 0
        %1412 = vmatpush.bf16.msra.mxu0 0
        %1413 = vmatpush.bf16.msra.mxu0 0
        %1414 = vmatpush.bf16.msra.mxu0 0
        %1415 = vmatpush.bf16.msra.mxu0 0
        %1416 = vmatpush.bf16.msra.mxu0 %v1407
        %1417 = vmatmul.bf16.gmra.mxu0 %v1404
        %v1418 = vpop.f32.mrf.mxu0
        %v1419 = vadd.f32 0.0, %v1418
        %v1420 = vpop.f32.mrf.mxu0
        %1421 = vdwg.mxu0
        %1422 = vrot.lane.b32.xlu0 %v1079, 48
        %v1423 = vpop.permute.xlu0 %1422
        %v1425 = vsel %vm1057, %v1400, 0
        %v1428 = vsel %vm1132, %v1423, 0
        %1430 = vmatpush.bf16.msra.mxu0 0
        %1431 = vmatpush.bf16.msra.mxu0 0
        %1432 = vmatpush.bf16.msra.mxu0 0
        %1433 = vmatpush.bf16.msra.mxu0 0
        %1434 = vmatpush.bf16.msra.mxu0 0
        %1435 = vmatpush.bf16.msra.mxu0 0
        %1436 = vmatpush.bf16.msra.mxu0 0
        %1437 = vmatpush.bf16.msra.mxu0 %v1428
        %1438 = vmatmul.bf16.gmra.mxu0 %v1425
        %v1439 = vpop.f32.mrf.mxu0
        %v1440 = vadd.f32 0.0, %v1439
        %v1441 = vpop.f32.mrf.mxu0
        %1442 = vdwg.mxu0
        %v1443 = vpack.c.bf16 %v1440, %v1419
        %s1444 = scalar_lea.vmem %s890, 8
        %v1445 = vld [vmem:[%s1444] sm:$0xf]
        %v1447 = vsel %vm1057, %v1443, 0
        %v1450 = vsel %vm1132, %v1445, 0
        %1452 = vmatpush.bf16.msra.mxu0 0
        %1453 = vmatpush.bf16.msra.mxu0 0
        %1454 = vmatpush.bf16.msra.mxu0 0
        %1455 = vmatpush.bf16.msra.mxu0 0
        %1456 = vmatpush.bf16.msra.mxu0 0
        %1457 = vmatpush.bf16.msra.mxu0 0
        %1458 = vmatpush.bf16.msra.mxu0 0
        %1459 = vmatpush.bf16.msra.mxu0 %v1450
        %1460 = vmatmul.bf16.gmra.mxu0 %v1447
        %v1461 = vpop.f32.mrf.mxu0
        %v1462 = vadd.f32 0.0, %v1461
        %v1463 = vpop.f32.mrf.mxu0
        %v1464 = vadd.f32 0.0, %v1463
        %1465 = vdwg.mxu0
        %v1466 = vadd.f32 %v1325, %v1462
        %v1467 = vadd.f32 %v1327, %v1464
        %1468 = vrot.lane.b32.xlu0 %v1054, 104
        %v1469 = vpop.permute.xlu0 %1468
        %1470 = vrot.lane.b32.xlu0 %v1054, 72
        %v1471 = vpop.permute.xlu0 %1470
        %v1473 = vsel %vm1057, %v1469, 0
        %v1476 = vsel %vm1057, %v1471, 0
        %1478 = vmatpush.bf16.xpose.msra.mxu0 0
        %1479 = vmatpush.bf16.xpose.msra.mxu0 0
        %1480 = vmatpush.bf16.xpose.msra.mxu0 0
        %1481 = vmatpush.bf16.xpose.msra.mxu0 0
        %1482 = vmatpush.bf16.xpose.msra.mxu0 0
        %1483 = vmatpush.bf16.xpose.msra.mxu0 0
        %1484 = vmatpush.bf16.xpose.msra.mxu0 0
        %1485 = vmatpush.bf16.xpose.msra.mxu0 %v1476
        %1486 = vmatmul.bf16.gmra.mxu0 %v1473
        %v1487 = vpop.f32.mrf.mxu0
        %v1488 = vadd.f32 0.0, %v1487
        %v1489 = vpop.f32.mrf.mxu0
        %1490 = vdwg.mxu0
        %1491 = vrot.lane.b32.xlu0 %v1079, 104
        %v1492 = vpop.permute.xlu0 %1491
        %1493 = vrot.lane.b32.xlu0 %v1079, 72
        %v1494 = vpop.permute.xlu0 %1493
        %v1496 = vsel %vm1057, %v1492, 0
        %v1499 = vsel %vm1057, %v1494, 0
        %1501 = vmatpush.bf16.xpose.msra.mxu0 0
        %1502 = vmatpush.bf16.xpose.msra.mxu0 0
        %1503 = vmatpush.bf16.xpose.msra.mxu0 0
        %1504 = vmatpush.bf16.xpose.msra.mxu0 0
        %1505 = vmatpush.bf16.xpose.msra.mxu0 0
        %1506 = vmatpush.bf16.xpose.msra.mxu0 0
        %1507 = vmatpush.bf16.xpose.msra.mxu0 0
        %1508 = vmatpush.bf16.xpose.msra.mxu0 %v1499
        %1509 = vmatmul.bf16.gmra.mxu0 %v1496
        %v1510 = vpop.f32.mrf.mxu0
        %v1511 = vadd.f32 0.0, %v1510
        %v1512 = vpop.f32.mrf.mxu0
        %1513 = vdwg.mxu0
        %v1514 = vmul.f32 %v1488, 0.35355338
        %v1515 = vmul.f32 %v1511, 0.35355338
        %v1516 = vsel %vm1057, %v1514, -inf
        %1517 = vmax.xlane.f32.xlu0 %v1516
        %v1518 = vpop.xlane.xlu0 %1517
        %v1519 = vsel %vm1057, %v1515, -inf
        %1520 = vmax.xlane.f32.xlu0 %v1519
        %v1521 = vpop.xlane.xlu0 %1520
        %v1522 = vsub.f32 %v1514, %v1518
        %v1523 = vsub.f32 %v1515, %v1521
        %v1524 = vmul.f32 %v1522, 1.442695
        %v1525 = vpow.pop %v1524
        %v1526 = vmul.f32 %v1523, 1.442695
        %v1527 = vpow.pop %v1526
        %v1528 = vsel %vm1057, %v1525, 0.0
        %1529 = vadd.xlane.f32.xlu0 %v1528
        %v1530 = vpop.xlane.xlu0 %1529
        %v1531 = vsel %vm1057, %v1527, 0.0
        %1532 = vadd.xlane.f32.xlu0 %v1531
        %v1533 = vpop.xlane.xlu0 %1532
        %v1534 = vrcp.pop %v1530
        %v1535 = vrcp.pop %v1533
        %v1536 = vmul.f32 %v1525, %v1534
        %v1537 = vmul.f32 %v1527, %v1535
        %v1538 = vpack.c.bf16 %v1536, %v1536
        %v1539 = vpack.c.bf16 %v1537, %v1537
        %1540 = vrot.lane.b32.xlu0 %v1054, 40
        %v1541 = vpop.permute.xlu0 %1540
        %v1543 = vsel %vm1057, %v1538, 0
        %v1546 = vsel %vm1132, %v1541, 0
        %1548 = vmatpush.bf16.msra.mxu0 0
        %1549 = vmatpush.bf16.msra.mxu0 0
        %1550 = vmatpush.bf16.msra.mxu0 0
        %1551 = vmatpush.bf16.msra.mxu0 0
        %1552 = vmatpush.bf16.msra.mxu0 0
        %1553 = vmatpush.bf16.msra.mxu0 0
        %1554 = vmatpush.bf16.msra.mxu0 0
        %1555 = vmatpush.bf16.msra.mxu0 %v1546
        %1556 = vmatmul.bf16.gmra.mxu0 %v1543
        %v1557 = vpop.f32.mrf.mxu0
        %v1558 = vadd.f32 0.0, %v1557
        %v1559 = vpop.f32.mrf.mxu0
        %1560 = vdwg.mxu0
        %1561 = vrot.lane.b32.xlu0 %v1079, 40
        %v1562 = vpop.permute.xlu0 %1561
        %v1564 = vsel %vm1057, %v1539, 0
        %v1567 = vsel %vm1132, %v1562, 0
        %1569 = vmatpush.bf16.msra.mxu0 0
        %1570 = vmatpush.bf16.msra.mxu0 0
        %1571 = vmatpush.bf16.msra.mxu0 0
        %1572 = vmatpush.bf16.msra.mxu0 0
        %1573 = vmatpush.bf16.msra.mxu0 0
        %1574 = vmatpush.bf16.msra.mxu0 0
        %1575 = vmatpush.bf16.msra.mxu0 0
        %1576 = vmatpush.bf16.msra.mxu0 %v1567
        %1577 = vmatmul.bf16.gmra.mxu0 %v1564
        %v1578 = vpop.f32.mrf.mxu0
        %v1579 = vadd.f32 0.0, %v1578
        %v1580 = vpop.f32.mrf.mxu0
        %1581 = vdwg.mxu0
        %v1582 = vpack.c.bf16 %v1579, %v1558
        %s1583 = scalar_lea.vmem %s890, 12
        %v1584 = vld [vmem:[%s1583] sm:$0xf]
        %v1586 = vsel %vm1057, %v1582, 0
        %v1589 = vsel %vm1132, %v1584, 0
        %1591 = vmatpush.bf16.msra.mxu0 0
        %1592 = vmatpush.bf16.msra.mxu0 0
        %1593 = vmatpush.bf16.msra.mxu0 0
        %1594 = vmatpush.bf16.msra.mxu0 0
        %1595 = vmatpush.bf16.msra.mxu0 0
        %1596 = vmatpush.bf16.msra.mxu0 0
        %1597 = vmatpush.bf16.msra.mxu0 0
        %1598 = vmatpush.bf16.msra.mxu0 %v1589
        %1599 = vmatmul.bf16.gmra.mxu0 %v1586
        %v1600 = vpop.f32.mrf.mxu0
        %v1601 = vadd.f32 0.0, %v1600
        %v1602 = vpop.f32.mrf.mxu0
        %v1603 = vadd.f32 0.0, %v1602
        %1604 = vdwg.mxu0
        %v1605 = vadd.f32 %v1466, %v1601
        %v1606 = vadd.f32 %v1467, %v1603
        %v1607 = vadd.f32 %v946, %v1605
        %v1608 = vadd.f32 %v947, %v1606
        %v1609 = vld [vmem:[%s745] sm:$0x1]
        %v1611 = vperm.slane %v1609, 0
        %v1613 = vadd.f32 %v1607, %v1611
        %v1614 = vadd.f32 %v1608, %v1611
        %v1615 = vld [vmem:[%s754] sm:$0x1]
        %v1616 = vld [vmem:[%s763] sm:$0x1]
        %v1617 = vsel %vm950, %v1613, 0.0
        %1618 = vadd.xlane.f32.xlu0 %v1617
        %v1619 = vpop.xlane.xlu0 %1618
        %v1620 = vsel %vm950, %v1614, 0.0
        %1621 = vadd.xlane.f32.xlu0 %v1620
        %v1622 = vpop.xlane.xlu0 %1621
        %v1623 = vmul.f32 %v1619, %v963
        %v1624 = vmul.f32 %v1622, %v963
        %v1625 = vsub.f32 %v1613, %v1623
        %v1626 = vsub.f32 %v1614, %v1624
        %v1627 = vmul.f32 %v1625, %v1625
        %v1628 = vmul.f32 %v1626, %v1626
        %v1629 = vsel %vm950, %v1627, 0.0
        %1630 = vadd.xlane.f32.xlu0 %v1629
        %v1631 = vpop.xlane.xlu0 %1630
        %v1632 = vsel %vm950, %v1628, 0.0
        %1633 = vadd.xlane.f32.xlu0 %v1632
        %v1634 = vpop.xlane.xlu0 %1633
        %v1635 = vmul.f32 %v1631, %v963
        %v1636 = vmul.f32 %v1634, %v963
        %v1637 = vadd.f32 %v1635, 1e-05
        %v1638 = vadd.f32 %v1636, 1e-05
        %v1639 = vrsqrt.pop %v1637
        %v1640 = vmul.f32 %v1639, %v1637
        %v1641 = vmul.f32 %v1640, %v1639
        %v1642 = vmul.f32 0.5, %v1641
        %v1643 = vsub.f32 1.5, %v1642
        %v1644 = vmul.f32 %v1639, %v1643
        %vm1645 = vweird.f32 %v1637
        %vm1646 = vweird.f32 %v1639
        %vm1647 = vmor %vm1645, %vm1646
        %v1648 = vsel %vm1647, %v1639, %v1644
        %v1649 = vrsqrt.pop %v1638
        %v1650 = vmul.f32 %v1649, %v1638
        %v1651 = vmul.f32 %v1650, %v1649
        %v1652 = vmul.f32 0.5, %v1651
        %v1653 = vsub.f32 1.5, %v1652
        %v1654 = vmul.f32 %v1649, %v1653
        %vm1655 = vweird.f32 %v1638
        %vm1656 = vweird.f32 %v1649
        %vm1657 = vmor %vm1655, %vm1656
        %v1658 = vsel %vm1657, %v1649, %v1654
        %v1659 = vmul.f32 %v1625, %v1648
        %v1660 = vmul.f32 %v1626, %v1658
        %v1662 = vperm.slane %v1615, 0
        %v1664 = vmul.f32 %v1659, %v1662
        %v1665 = vmul.f32 %v1660, %v1662
        %v1667 = vperm.slane %v1616, 0
        %v1669 = vadd.f32 %v1664, %v1667
        %v1670 = vadd.f32 %v1665, %v1667
        %v1671 = vpack.c.bf16 %v1670, %v1669
        %v1672 = vld [vmem:[%s895] sm:$0xf]
        %v1673 = vld [vmem:[%s895 + $0x4] sm:$0xf]
        %v1674 = vld [vmem:[%s895 + $0x8] sm:$0xf]
        %v1675 = vld [vmem:[%s895 + $0xc] sm:$0xf]
        %v1676 = vld [vmem:[%s772] sm:$0x1]
        %v1678 = vperm.slane %v1676, 0
        %v1684 = vunpack.c.l.b16 %v1672
        %v1685 = vunpack.c.l.b16 %v1673
        %v1686 = vunpack.c.l.b16 %v1674
        %v1687 = vunpack.c.l.b16 %v1675
        %v1688 = vpack.c.b16 %v1685, %v1684
        %v1689 = vpack.c.b16 %v1687, %v1686
        %v1693 = vsel %vm950, %v1671, 0
        %1695 = vmatpush.bf16.msra.mxu0 0
        %1696 = vmatpush.bf16.msra.mxu0 0
        %1697 = vmatpush.bf16.msra.mxu0 0
        %1698 = vmatpush.bf16.msra.mxu0 0
        %1699 = vmatpush.bf16.msra.mxu0 0
        %1700 = vmatpush.bf16.msra.mxu0 0
        %1701 = vmatpush.bf16.msra.mxu0 %v1689
        %1702 = vmatpush.bf16.msra.mxu0 %v1688
        %1703 = vmatmul.bf16.gmra.mxu0 %v1693
        %v1704 = vpop.f32.mrf.mxu0
        %v1705 = vadd.f32 %v1678, %v1704
        %v1706 = vpop.f32.mrf.mxu0
        %v1707 = vadd.f32 %v1678, %v1706
        %1708 = vdwg.mxu0
        %v1709 = vmax.f32 %v1705, 0.0
        %v1710 = vmax.f32 %v1707, 0.0
        %v1711 = vpack.c.bf16 %v1710, %v1709
        %v1712 = vld [vmem:[%s900] sm:$0xf]
        %v1713 = vld [vmem:[%s900 + $0x4] sm:$0xf]
        %v1714 = vld [vmem:[%s900 + $0x8] sm:$0xf]
        %v1715 = vld [vmem:[%s900 + $0xc] sm:$0xf]
        %v1716 = vld [vmem:[%s900 + $0x10] sm:$0xf]
        %v1717 = vld [vmem:[%s900 + $0x14] sm:$0xf]
        %v1718 = vld [vmem:[%s900 + $0x18] sm:$0xf]
        %v1719 = vld [vmem:[%s900 + $0x1c] sm:$0xf]
        %v1720 = vld [vmem:[%s781] sm:$0x1]
        %v1722 = vperm.slane %v1720, 0
        %v1732 = vunpack.c.l.b16 %v1712
        %v1733 = vunpack.c.l.b16 %v1713
        %v1734 = vunpack.c.l.b16 %v1714
        %v1735 = vunpack.c.l.b16 %v1715
        %v1736 = vunpack.c.l.b16 %v1716
        %v1737 = vunpack.c.l.b16 %v1717
        %v1738 = vunpack.c.l.b16 %v1718
        %v1739 = vunpack.c.l.b16 %v1719
        %v1740 = vpack.c.b16 %v1733, %v1732
        %v1741 = vpack.c.b16 %v1735, %v1734
        %v1742 = vpack.c.b16 %v1737, %v1736
        %v1743 = vpack.c.b16 %v1739, %v1738
        %vm1748 = vcmask 523264
        %v1750 = vsel %vm1748, %v1711, 0
        %1752 = vmatpush.bf16.msra.mxu0 0
        %1753 = vmatpush.bf16.msra.mxu0 0
        %1754 = vmatpush.bf16.msra.mxu0 0
        %1755 = vmatpush.bf16.msra.mxu0 0
        %1756 = vmatpush.bf16.msra.mxu0 %v1743
        %1757 = vmatpush.bf16.msra.mxu0 %v1742
        %1758 = vmatpush.bf16.msra.mxu0 %v1741
        %1759 = vmatpush.bf16.msra.mxu0 %v1740
        %1760 = vmatmul.bf16.gmra.mxu0 %v1750
        %v1761 = vpop.f32.mrf.mxu0
        %v1762 = vadd.f32 %v1722, %v1761
        %v1763 = vpop.f32.mrf.mxu0
        %v1764 = vadd.f32 %v1722, %v1763
        %1765 = vdwg.mxu0
        %v1766 = vadd.f32 %v1613, %v1762
        %v1767 = vadd.f32 %v1614, %v1764
        %1768 = vst.msk [vmem:[#allocation2] sm:$0xff] %vm950, %v1766
        %1769 = vst.msk [vmem:[#allocation2 + $0x8] sm:$0xff] %vm950, %v1767
        %p1770 = scmp.eq.s32.totalorder %s41, 1
        // Predicated region
        $region133: #{tpu_custom_call.1} parent=91 // pred_check
          %p1771 = pneg %p1770
        $region134: #{tpu_custom_call.1} parent=91 // pred_check_branch
          %1773 = sbr.rel (%p1771) target = $region136
        $region135: #{tpu_custom_call.1} parent=91 // pred_region
          %v1774 = vpack.c.bf16 %v1767, %v1766
          %v1775 = vld [vmem:[%s16] sm:$0xf]
          %v1776 = vld [vmem:[%s16 + $0x4] sm:$0xf]
          %v1777 = vld [vmem:[%s16 + $0x8] sm:$0xf]
          %v1778 = vld [vmem:[%s16 + $0xc] sm:$0xf]
          %v1779 = vld [vmem:[%s17] sm:$0x1]
          %v1781 = vperm.slane %v1779, 0
          %v1787 = vunpack.c.l.b16 %v1775
          %v1788 = vunpack.c.l.b16 %v1776
          %v1789 = vunpack.c.l.b16 %v1777
          %v1790 = vunpack.c.l.b16 %v1778
          %v1791 = vpack.c.b16 %v1788, %v1787
          %v1792 = vpack.c.b16 %v1790, %v1789
          %v1796 = vsel %vm950, %v1774, 0
          %1798 = vmatpush.bf16.msra.mxu0 0
          %1799 = vmatpush.bf16.msra.mxu0 0
          %1800 = vmatpush.bf16.msra.mxu0 0
          %1801 = vmatpush.bf16.msra.mxu0 0
          %1802 = vmatpush.bf16.msra.mxu0 0
          %1803 = vmatpush.bf16.msra.mxu0 0
          %1804 = vmatpush.bf16.msra.mxu0 %v1792
          %1805 = vmatpush.bf16.msra.mxu0 %v1791
          %1806 = vmatmul.bf16.gmra.mxu0 %v1796
          %v1807 = vpop.f32.mrf.mxu0
          %v1808 = vadd.f32 %v1781, %v1807
          %v1809 = vpop.f32.mrf.mxu0
          %v1810 = vadd.f32 %v1781, %v1809
          %1811 = vdwg.mxu0
          %vm1812 = vcmask 130048
          %1813 = vst.msk [vmem:[#allocation18] sm:$0xff] %vm1812, %v1808
          %1814 = vst.msk [vmem:[#allocation18 + $0x8] sm:$0xff] %vm1812, %v1810
        $region136: #{tpu_custom_call.1} parent=91 // pred_fallthru
          _
        // Predicated region
        $region137: #{tpu_custom_call.1} parent=91 // pred_check
          %p1815 = pneg %p492
        $region138: #{tpu_custom_call.1} parent=91 // pred_check_branch
          %1817 = sbr.rel (%p1815) target = $region140
        $region139: #{tpu_custom_call.1} parent=91 // pred_region
          %1819 = vsyncadd [#allocation5], 0
          %s1820 = sshll.u32 [#allocation18], 4
          %s1821 = int_to_ptr.vmem [resolvable:$true] %s1820
          %s1822 = sshll.u32 %s18, 4
          %s1823 = int_to_ptr.hbm [resolvable:$true] %s1822
          %1828 = dma.vmem_to_hbm [thread:$0]  %s1821, 256, %s1823, [#allocation5], 128, 128, 8
        $region140: #{tpu_custom_call.1} parent=91 // pred_fallthru
          _
        // Predicated region
        $region141: #{tpu_custom_call.1} parent=91 // pred_check
          %p1829 = pneg %p492
        $region142: #{tpu_custom_call.1} parent=91 // pred_check_branch
          %1831 = sbr.rel (%p1829) target = $region144
        $region143: #{tpu_custom_call.1} parent=91 // pred_region
          %1833 = dma.done [#allocation5], 256
        $region144: #{tpu_custom_call.1} parent=91 // pred_fallthru
          _
      $region92: #{tpu_custom_call.1} parent=5 // pred_fallthru
        _
      %p1834 = scmp.le.s32.totalorder 2, %s36
      // Predicated region
      $region145: #{tpu_custom_call.1} parent=5 // pred_check
        %p1835 = pneg %p1834
      $region146: #{tpu_custom_call.1} parent=5 // pred_check_branch
        %1837 = sbr.rel (%p1835) target = $region148
      $region147: #{tpu_custom_call.1} parent=5 // pred_region
        %s1838 = ssub.s32 %s36, 2
      $region148: #{tpu_custom_call.1} parent=5 // pred_fallthru
        _
    $region6: #{tpu_custom_call.1} parent=1 // loop_footer
      %s40 = sadd.s32 1, %s36
    $region7: #{tpu_custom_call.1} parent=1 // loop_footer_branch
      %35 = sbr.rel target = $region3
    $region8: #{tpu_custom_call.1} parent=1 // loop_exit
      _
    %1839 = vsyncpa [#allocation4], 1
    %s1840 = scalar_lea.sflag [#allocation4], 1
    %1841 = vsyncpa %s1840, 1
    %1842 = vsyncpa [#allocation7], 1
    %1843 = vsyncpa [#allocation10], 1
    %s1844 = scalar_lea.sflag [#allocation10], 1
    %1845 = vsyncpa %s1844, 1
    %1846 = vsyncpa [#allocation13], 1
    %s1847 = scalar_lea.sflag [#allocation13], 1
    %1848 = vsyncpa %s1847, 1
    %1849 = vsyncpa [#allocation16], 1
    %s1850 = scalar_lea.sflag [#allocation16], 1
    %1851 = vsyncpa %s1850, 1
    %1852 = vsyncpa [#allocation5], 1
    %s1853 = scalar_lea.sflag [#allocation5], 1
    %1854 = vsyncpa %s1853, 1

</llo_original>
